<compile_context>
chip_gen: v6e
topology: v6e:2x2x1
jax: 0.10.0
libtpu: 0.0.40
codegen_flags: <defaults>
</compile_context>

<pallas_src>
import jax
import jax.numpy as jnp
from jax import lax
from jax.experimental import pallas as pl
from jax.experimental.pallas import tpu as pltpu


def tramap_kernel(
    x_ref,        # (B*S, C)   bf16  stacked map tokens
    qin_ref,      # (B, D+2)   f32   [time_emb+day_emb | rain | distance]
    posb_ref,     # (B*S, 5D)  f32   per-token additive slab (biases + pos terms)
    wenc_ref,     # (C, 4D)    bf16  [Wconv | Wconv@Wq*s | Wconv@Wk | Wconv@Wv]
    wdstk_ref,    # (D, 5D+2F) bf16  [e_wo | e_w1 | d_wq*s | d_wk | d_wv | d_wo | d_w1]
    ew2_ref,      # (F, D)     bf16  encoder FFN second layer
    vec_ref,      # (8, max(D,F)) f32 small-vector slab
    out_ref,      # (B, 128)   f32   lane-dense output slab (scalar in lane 0)
):
    f32 = jnp.float32
    bf16 = jnp.bfloat16

    BS, C = x_ref.shape
    D = wenc_ref.shape[1] // 4
    F = ew2_ref.shape[0]
    B = out_ref.shape[0]
    S = BS // B

    # ---- fused backbone conv + encoder QKV: ONE (BS,C)@(C,4D) MXU matmul --------
    big = jnp.dot(x_ref[...], wenc_ref[...], preferred_element_type=f32)  # (BS,4D)
    big = big + posb_ref[:, 0:4 * D]         # conv bias + q/k positional, one add
    feat = big[:, 0:D]                       # backbone features (residual input)
    qk = big[:, D:3 * D]                     # fused q|k slab (pos already added)
    v = big[:, 3 * D:4 * D].astype(bf16)

    # ---- encoder self-attention: static unroll over B, all operands 2-D ---------
    # NOTE: at S=64 everything fits in a few vregs; for large maps this would be
    # tiled flash-style over the KV axis.
    ao_blocks = []
    for b in range(B):
        qb = qk[b * S:(b + 1) * S, 0:D].astype(bf16)        # scale folded into Wq
        kb = qk[b * S:(b + 1) * S, D:2 * D].astype(bf16)
        vb = v[b * S:(b + 1) * S, :]
        s = lax.dot_general(qb, kb, (((1,), (1,)), ((), ())),
                            preferred_element_type=f32)      # (S, S)
        m = jnp.max(s, axis=-1, keepdims=True)
        p = jnp.exp(s - m)
        attn = p * pl.reciprocal(jnp.sum(p, axis=-1, keepdims=True), approx=True)
        ao_blocks.append(jnp.dot(attn.astype(bf16), vb,
                                 preferred_element_type=f32))  # (S, D)
    ao = jnp.concatenate(ao_blocks, axis=0)                    # (BS, D)

    # stacked-weight static column offsets
    o_ewo = 0
    o_ew1 = D
    o_dwq = D + F
    o_dkv = o_dwq + D          # [d_wk | d_wv] contiguous 2D block
    o_dwo = o_dkv + 2 * D
    o_dw1 = o_dwo + D

    # ---- encoder out-projection + FFN at M = BS ---------------------------------
    src = feat + jnp.dot(ao.astype(bf16), wdstk_ref[:, o_ewo:o_ewo + D],
                         preferred_element_type=f32)
    h = jnp.maximum(jnp.dot(src.astype(bf16), wdstk_ref[:, o_ew1:o_ew1 + F],
                            preferred_element_type=f32), 0.0)  # (BS, F)
    memory = src + jnp.dot(h.astype(bf16), ew2_ref[...],
                           preferred_element_type=f32)         # (BS, D)

    # ---- query embedding: time + day + rain/distance Linear(1,D)  (VPU) ---------
    w_rain = vec_ref[0:1, 0:D]
    w_dist = vec_ref[1:2, 0:D]
    b_rd = vec_ref[2:3, 0:D]
    w_out = vec_ref[3:4, 0:D]
    w2out = vec_ref[4:5, 0:F]          # (d_w2 @ w_out)^T, folded head weight
    b_out = vec_ref[5:6, 0:1]

    qemb = (qin_ref[:, 0:D]
            + qin_ref[:, D:D + 1] * w_rain
            + qin_ref[:, D + 1:D + 2] * w_dist
            + b_rd)                                            # (B, D)

    # ---- decoder: projections batched to M = B ----------------------------------
    q2 = jnp.dot(qemb.astype(bf16), wdstk_ref[:, o_dwq:o_dwq + D],
                 preferred_element_type=f32)                   # (B, D), scale folded
    kv2 = jnp.dot(memory.astype(bf16), wdstk_ref[:, o_dkv:o_dkv + 2 * D],
                  preferred_element_type=f32)                  # (BS, 2D) fused K/V
    k2 = kv2[:, 0:D] + posb_ref[:, 4 * D:5 * D]                # decoder-k positional
    v2 = kv2[:, D:2 * D]

    # cross-attention scores/context as VPU/XLU reductions (no M=1 MXU matmuls)
    row_id = lax.broadcasted_iota(jnp.int32, (B, 1), 0)
    co = jnp.zeros((B, D), f32)
    for b in range(B):
        kb = k2[b * S:(b + 1) * S, :]
        vb = v2[b * S:(b + 1) * S, :]
        s2 = jnp.sum(kb * q2[b:b + 1, :], axis=-1, keepdims=True)   # (S, 1)
        m2 = jnp.max(s2, axis=0, keepdims=True)
        p2 = jnp.exp(s2 - m2)
        a2 = p2 * pl.reciprocal(jnp.sum(p2, axis=0, keepdims=True), approx=True)
        co_b = jnp.sum(a2 * vb, axis=0, keepdims=True)              # (1, D)
        co = co + (row_id == b).astype(f32) * co_b                  # place row b

    hs = qemb + jnp.dot(co.astype(bf16), wdstk_ref[:, o_dwo:o_dwo + D],
                        preferred_element_type=f32)                 # (B, D)
    h2 = jnp.maximum(jnp.dot(hs.astype(bf16), wdstk_ref[:, o_dw1:o_dw1 + F],
                             preferred_element_type=f32), 0.0)      # (B, F)

    # ---- output head with d_w2 folded in: VPU multiply + lane reduce ------------
    out_val = (jnp.sum(hs * w_out, axis=-1, keepdims=True)
               + jnp.sum(h2 * w2out, axis=-1, keepdims=True)
               + b_out)                                             # (B, 1)
    out_ref[...] = jnp.broadcast_to(out_val, out_ref.shape).astype(out_ref.dtype)


def init_params(key, C, D, F, S):
    ks = jax.random.split(key, 19)
    w = lambda k, shape: (0.02 * jax.random.normal(k, shape)).astype(jnp.float32)
    z = lambda shape: jnp.zeros(shape, jnp.float32)
    return dict(
        w_conv=w(ks[0], (C, D)), b_conv=z((1, D)),
        pos=w(ks[1], (S, D)),
        time_embed=w(ks[2], (2400, D)),
        day_embed=w(ks[3], (7, D)),
        w_rain=w(ks[4], (1, D)), b_rain=z((1, D)),
        w_dist=w(ks[5], (1, D)), b_dist=z((1, D)),
        e_wq=w(ks[6], (D, D)), e_wk=w(ks[7], (D, D)),
        e_wv=w(ks[8], (D, D)), e_wo=w(ks[9], (D, D)),
        e_w1=w(ks[10], (D, F)), e_w2=w(ks[11], (F, D)),
        d_wq=w(ks[12], (D, D)), d_wk=w(ks[13], (D, D)),
        d_wv=w(ks[14], (D, D)), d_wo=w(ks[15], (D, D)),
        d_w1=w(ks[16], (D, F)), d_w2=w(ks[17], (F, D)),
        w_out=w(ks[18], (D, 1)), b_out=z((1, 1)),
    )


def tramap_forward(params, samples, query):
    """samples: [B, C, H, W] (NCHW), query: [B, 4] = (rain, distance, time, day)."""
    f32, bf16 = jnp.float32, jnp.bfloat16
    B, C, H, W = samples.shape
    S = H * W
    BS = B * S
    D = params["w_conv"].shape[1]
    F = params["e_w1"].shape[1]
    scale = 1.0 / (D ** 0.5)
    OUT_LANES = 128

    # --- input layout glue: NCHW -> NHWC -> (B*S, C) stacked lane-major tokens ---
    x_tok = jnp.transpose(samples, (0, 2, 3, 1)).reshape(BS, C).astype(bf16)

    # nn.Embedding lookups are gathers (wrapper glue); combined with rain/distance
    # scalars into one small per-sample array.
    time_idx = query[:, 2].astype(jnp.int32)
    day_idx = query[:, 3].astype(jnp.int32)
    te = jnp.take(params["time_embed"], time_idx, axis=0)      # (B, D)
    de = jnp.take(params["day_embed"], day_idx, axis=0)        # (B, D)
    q_in = jnp.concatenate([te + de, query[:, 0:2].astype(f32)], axis=1)  # (B, D+2)

    # --- parameter-only folding (no activations): conv folded into QKV, scale into
    #     Wq, pos/bias terms into one per-token slab, d_w2 into the output head ---
    e_wq_s = params["e_wq"] * scale
    w_qkv = jnp.concatenate([e_wq_s, params["e_wk"], params["e_wv"]], axis=1)   # (D,3D)
    w_enc_in = jnp.concatenate(
        [params["w_conv"], params["w_conv"] @ w_qkv], axis=1).astype(bf16)      # (C,4D)

    bias_enc = jnp.concatenate(
        [params["b_conv"], params["b_conv"] @ w_qkv], axis=1)                   # (1,4D)
    pos_qk = params["pos"] @ jnp.concatenate([e_wq_s, params["e_wk"]], axis=1)  # (S,2D)
    pos_enc = jnp.concatenate(
        [jnp.zeros((S, D), f32), pos_qk, jnp.zeros((S, D), f32)], axis=1)       # (S,4D)
    pos_dk = params["pos"] @ params["d_wk"]                                     # (S,D)
    posbias = jnp.tile(
        jnp.concatenate([pos_enc + bias_enc, pos_dk], axis=1), (B, 1))          # (BS,5D)

    # stacked D-row weights: one DMA instead of seven
    w_dstack = jnp.concatenate(
        [params["e_wo"], params["e_w1"], params["d_wq"] * scale,
         params["d_wk"], params["d_wv"], params["d_wo"], params["d_w1"]],
        axis=1).astype(bf16)                                                    # (D,5D+2F)
    e_w2 = params["e_w2"].astype(bf16)                                          # (F, D)

    # small-vector slab: w_rain, w_dist, b_rain+b_dist, w_out^T, (d_w2@w_out)^T, b_out
    VW = max(D, F)
    pad = lambda v: jnp.pad(v, ((0, 0), (0, VW - v.shape[1])))
    vecs = jnp.concatenate([
        pad(params["w_rain"]), pad(params["w_dist"]),
        pad(params["b_rain"] + params["b_dist"]),
        pad(params["w_out"].T),
        pad((params["d_w2"] @ params["w_out"]).T),
        pad(params["b_out"]),
        jnp.zeros((2, VW), f32)], axis=0)                                       # (8, VW)

    inputs = (x_tok, q_in, posbias, w_enc_in, w_dstack, e_w2, vecs)

    flops = (
        2 * BS * C * 4 * D            # fused conv + QKV input matmul
        + B * (2 * S * S * D * 2)     # self-attn scores + attn@V
        + 2 * BS * D * D              # encoder out projection
        + 2 * BS * D * F * 2          # encoder FFN
        + 2 * BS * D * 2 * D          # decoder fused K/V
        + 2 * B * D * D * 2           # decoder q / out projections
        + 2 * B * D * F               # decoder FFN first layer
        + B * 2 * S * D * 2           # decoder score + context reductions
        + 2 * B * (D + F)             # output head (d_w2 folded in)
    )
    transcendentals = B * (S * S + S)
    bytes_accessed = int(sum(a.size * a.dtype.itemsize for a in inputs)
                         + B * OUT_LANES * 4)

    # Grid-less call: the whole (tiny) problem is one invocation — no per-grid-step
    # DMA/semaphore overhead, every matmul runs at M = B*S = 128.
    out_pad = pl.pallas_call(
        tramap_kernel,
        out_shape=jax.ShapeDtypeStruct((B, OUT_LANES), f32),
        compiler_params=pltpu.CompilerParams(
            vmem_limit_bytes=4 * 1024 * 1024,   # working set << 1 MiB
        ),
        cost_estimate=pl.CostEstimate(
            flops=flops, transcendentals=transcendentals,
            bytes_accessed=bytes_accessed),
    )(*inputs)
    # TODO(synk): on v7x a 2-TC split (pl.core_map / CORE_PARALLEL over batch) could
    # halve latency further; kept single-invocation since it is best on v5e/v6e and
    # the kernel is pure fixed overhead either way.
    return out_pad[:, 0:1]                      # (B, 1)


if __name__ == "__main__":
    B, C, H, W = 2, 4, 8, 8          # small map images -> S = 64, B*S = 128
    D, F = 32, 64                    # transformer.d_model, ffn width
    S = H * W

    key = jax.random.PRNGKey(0)
    kp, kx, kr, kdist, kt, kday = jax.random.split(key, 6)
    params = init_params(kp, C, D, F, S)

    samples = jax.random.normal(kx, (B, C, H, W), jnp.float32)
    rain = jax.random.uniform(kr, (B,), jnp.float32)
    distance = jax.random.uniform(kdist, (B,), jnp.float32) * 10.0
    time = jax.random.randint(kt, (B,), 0, 2400).astype(jnp.float32)
    day = jax.random.randint(kday, (B,), 0, 7).astype(jnp.float32)
    query = jnp.stack([rain, distance, time, day], axis=1)   # (B, 4)

    out = jax.jit(tramap_forward)(params, samples, query)
    out = jax.block_until_ready(out)
    assert out.shape == (B, 1) and out.dtype == jnp.float32
    print("KERNEL_OK")
</pallas_src>

<mosaic_0001>
module attributes {stable_mosaic.version = 11 : i64} {
  func.func @tramap_kernel(%arg0: memref<128x4xbf16, #tpu.memory_space<vmem>>, %arg1: memref<2x34xf32, #tpu.memory_space<vmem>>, %arg2: memref<128x160xf32, #tpu.memory_space<vmem>>, %arg3: memref<4x128xbf16, #tpu.memory_space<vmem>>, %arg4: memref<32x288xbf16, #tpu.memory_space<vmem>>, %arg5: memref<64x32xbf16, #tpu.memory_space<vmem>>, %arg6: memref<8x64xf32, #tpu.memory_space<vmem>>, %arg7: memref<2x128xf32, #tpu.memory_space<vmem>>) attributes {dimension_semantics = [], scalar_prefetch = 0 : i64, scratch_operands = 0 : i64, tpu.core_type = #tpu.core_type<tc>} {
    %c0 = arith.constant 0 : index
    %c0_0 = arith.constant 0 : index
    %0 = vector.load %arg0[%c0, %c0_0] : memref<128x4xbf16, #tpu.memory_space<vmem>>, vector<128x4xbf16>
    %c0_1 = arith.constant 0 : index
    %c0_2 = arith.constant 0 : index
    %1 = vector.load %arg3[%c0_1, %c0_2] : memref<4x128xbf16, #tpu.memory_space<vmem>>, vector<4x128xbf16>
    %cst = arith.constant dense<0.000000e+00> : vector<128x128xf32>
    %2 = tpu.matmul %0, %1, %cst {dimension_numbers = #tpu.dot_dimension_numbers<[1], [0], [0], [1], [0, 0, 1, 1], [], []>} : vector<128x4xbf16>, vector<4x128xbf16>, vector<128x128xf32> -> vector<128x128xf32>
    %c0_3 = arith.constant 0 : index
    %c0_4 = arith.constant 0 : index
    %3 = vector.load %arg2[%c0_3, %c0_4] : memref<128x160xf32, #tpu.memory_space<vmem>>, vector<128x128xf32>
    %4 = arith.addf %2, %3 : vector<128x128xf32>
    %5 = vector.extract_strided_slice %4 {offsets = [0, 0], sizes = [128, 32], strides = [1, 1]} : vector<128x128xf32> to vector<128x32xf32>
    %6 = vector.extract_strided_slice %4 {offsets = [0, 32], sizes = [128, 64], strides = [1, 1]} : vector<128x128xf32> to vector<128x64xf32>
    %7 = vector.extract_strided_slice %4 {offsets = [0, 96], sizes = [128, 32], strides = [1, 1]} : vector<128x128xf32> to vector<128x32xf32>
    %8 = arith.truncf %7 : vector<128x32xf32> to vector<128x32xbf16>
    %9 = vector.extract_strided_slice %6 {offsets = [0, 0], sizes = [64, 32], strides = [1, 1]} : vector<128x64xf32> to vector<64x32xf32>
    %10 = arith.truncf %9 : vector<64x32xf32> to vector<64x32xbf16>
    %11 = vector.extract_strided_slice %6 {offsets = [0, 32], sizes = [64, 32], strides = [1, 1]} : vector<128x64xf32> to vector<64x32xf32>
    %12 = arith.truncf %11 : vector<64x32xf32> to vector<64x32xbf16>
    %13 = vector.extract_strided_slice %8 {offsets = [0, 0], sizes = [64, 32], strides = [1, 1]} : vector<128x32xbf16> to vector<64x32xbf16>
    %cst_5 = arith.constant dense<0.000000e+00> : vector<64x64xf32>
    %14 = tpu.matmul %10, %12, %cst_5 {dimension_numbers = #tpu.dot_dimension_numbers<[1], [1], [0], [0], [0, 0, 1, 0], [], []>} : vector<64x32xbf16>, vector<64x32xbf16>, vector<64x64xf32> -> vector<64x64xf32>
    %cst_6 = arith.constant dense<0xFF800000> : vector<64xf32>
    %15 = vector.multi_reduction <maximumf>, %14, %cst_6 [1] : vector<64x64xf32> to vector<64xf32>
    %16 = vector.shape_cast %15 : vector<64xf32> to vector<64x1xf32>
    %17 = vector.broadcast %16 : vector<64x1xf32> to vector<64x64xf32>
    %18 = arith.subf %14, %17 : vector<64x64xf32>
    %19 = math.exp %18 : vector<64x64xf32>
    %cst_7 = arith.constant dense<0.000000e+00> : vector<64xf32>
    %20 = vector.multi_reduction <add>, %19, %cst_7 [1] : vector<64x64xf32> to vector<64xf32>
    %21 = vector.shape_cast %20 : vector<64xf32> to vector<64x1xf32>
    %22 = tpu.reciprocal %21 {approx = true} : vector<64x1xf32> -> vector<64x1xf32>
    %23 = vector.broadcast %22 : vector<64x1xf32> to vector<64x64xf32>
    %24 = arith.mulf %19, %23 : vector<64x64xf32>
    %25 = arith.truncf %24 : vector<64x64xf32> to vector<64x64xbf16>
    %cst_8 = arith.constant dense<0.000000e+00> : vector<64x32xf32>
    %26 = tpu.matmul %25, %13, %cst_8 {dimension_numbers = #tpu.dot_dimension_numbers<[1], [0], [0], [1], [0, 0, 1, 1], [], []>} : vector<64x64xbf16>, vector<64x32xbf16>, vector<64x32xf32> -> vector<64x32xf32>
    %27 = vector.extract_strided_slice %6 {offsets = [64, 0], sizes = [64, 32], strides = [1, 1]} : vector<128x64xf32> to vector<64x32xf32>
    %28 = arith.truncf %27 : vector<64x32xf32> to vector<64x32xbf16>
    %29 = vector.extract_strided_slice %6 {offsets = [64, 32], sizes = [64, 32], strides = [1, 1]} : vector<128x64xf32> to vector<64x32xf32>
    %30 = arith.truncf %29 : vector<64x32xf32> to vector<64x32xbf16>
    %31 = vector.extract_strided_slice %8 {offsets = [64, 0], sizes = [64, 32], strides = [1, 1]} : vector<128x32xbf16> to vector<64x32xbf16>
    %cst_9 = arith.constant dense<0.000000e+00> : vector<64x64xf32>
    %32 = tpu.matmul %28, %30, %cst_9 {dimension_numbers = #tpu.dot_dimension_numbers<[1], [1], [0], [0], [0, 0, 1, 0], [], []>} : vector<64x32xbf16>, vector<64x32xbf16>, vector<64x64xf32> -> vector<64x64xf32>
    %cst_10 = arith.constant dense<0xFF800000> : vector<64xf32>
    %33 = vector.multi_reduction <maximumf>, %32, %cst_10 [1] : vector<64x64xf32> to vector<64xf32>
    %34 = vector.shape_cast %33 : vector<64xf32> to vector<64x1xf32>
    %35 = vector.broadcast %34 : vector<64x1xf32> to vector<64x64xf32>
    %36 = arith.subf %32, %35 : vector<64x64xf32>
    %37 = math.exp %36 : vector<64x64xf32>
    %cst_11 = arith.constant dense<0.000000e+00> : vector<64xf32>
    %38 = vector.multi_reduction <add>, %37, %cst_11 [1] : vector<64x64xf32> to vector<64xf32>
    %39 = vector.shape_cast %38 : vector<64xf32> to vector<64x1xf32>
    %40 = tpu.reciprocal %39 {approx = true} : vector<64x1xf32> -> vector<64x1xf32>
    %41 = vector.broadcast %40 : vector<64x1xf32> to vector<64x64xf32>
    %42 = arith.mulf %37, %41 : vector<64x64xf32>
    %43 = arith.truncf %42 : vector<64x64xf32> to vector<64x64xbf16>
    %cst_12 = arith.constant dense<0.000000e+00> : vector<64x32xf32>
    %44 = tpu.matmul %43, %31, %cst_12 {dimension_numbers = #tpu.dot_dimension_numbers<[1], [0], [0], [1], [0, 0, 1, 1], [], []>} : vector<64x64xbf16>, vector<64x32xbf16>, vector<64x32xf32> -> vector<64x32xf32>
    %45 = tpu.concatenate %26, %44 in 0 : vector<64x32xf32>, vector<64x32xf32> -> vector<128x32xf32>
    %46 = arith.truncf %45 : vector<128x32xf32> to vector<128x32xbf16>
    %c0_13 = arith.constant 0 : index
    %c0_14 = arith.constant 0 : index
    %47 = vector.load %arg4[%c0_13, %c0_14] : memref<32x288xbf16, #tpu.memory_space<vmem>>, vector<32x32xbf16>
    %cst_15 = arith.constant dense<0.000000e+00> : vector<128x32xf32>
    %48 = tpu.matmul %46, %47, %cst_15 {dimension_numbers = #tpu.dot_dimension_numbers<[1], [0], [0], [1], [0, 0, 1, 1], [], []>} : vector<128x32xbf16>, vector<32x32xbf16>, vector<128x32xf32> -> vector<128x32xf32>
    %49 = arith.addf %5, %48 : vector<128x32xf32>
    %50 = arith.truncf %49 : vector<128x32xf32> to vector<128x32xbf16>
    %c0_16 = arith.constant 0 : index
    %c32 = arith.constant 32 : index
    %51 = vector.load %arg4[%c0_16, %c32] : memref<32x288xbf16, #tpu.memory_space<vmem>>, vector<32x64xbf16>
    %cst_17 = arith.constant dense<0.000000e+00> : vector<128x64xf32>
    %52 = tpu.matmul %50, %51, %cst_17 {dimension_numbers = #tpu.dot_dimension_numbers<[1], [0], [0], [1], [0, 0, 1, 1], [], []>} : vector<128x32xbf16>, vector<32x64xbf16>, vector<128x64xf32> -> vector<128x64xf32>
    %cst_18 = arith.constant 0.000000e+00 : f32
    %53 = vector.broadcast %cst_18 : f32 to vector<128x64xf32>
    %54 = arith.maximumf %52, %53 : vector<128x64xf32>
    %55 = arith.truncf %54 : vector<128x64xf32> to vector<128x64xbf16>
    %c0_19 = arith.constant 0 : index
    %c0_20 = arith.constant 0 : index
    %56 = vector.load %arg5[%c0_19, %c0_20] : memref<64x32xbf16, #tpu.memory_space<vmem>>, vector<64x32xbf16>
    %cst_21 = arith.constant dense<0.000000e+00> : vector<128x32xf32>
    %57 = tpu.matmul %55, %56, %cst_21 {dimension_numbers = #tpu.dot_dimension_numbers<[1], [0], [0], [1], [0, 0, 1, 1], [], []>} : vector<128x64xbf16>, vector<64x32xbf16>, vector<128x32xf32> -> vector<128x32xf32>
    %58 = arith.addf %49, %57 : vector<128x32xf32>
    %c0_22 = arith.constant 0 : index
    %c0_23 = arith.constant 0 : index
    %59 = vector.load %arg6[%c0_22, %c0_23] : memref<8x64xf32, #tpu.memory_space<vmem>>, vector<1x32xf32>
    %c1 = arith.constant 1 : index
    %c0_24 = arith.constant 0 : index
    %60 = vector.load %arg6[%c1, %c0_24] : memref<8x64xf32, #tpu.memory_space<vmem>>, vector<1x32xf32>
    %c2 = arith.constant 2 : index
    %c0_25 = arith.constant 0 : index
    %61 = vector.load %arg6[%c2, %c0_25] : memref<8x64xf32, #tpu.memory_space<vmem>>, vector<1x32xf32>
    %c3 = arith.constant 3 : index
    %c0_26 = arith.constant 0 : index
    %62 = vector.load %arg6[%c3, %c0_26] : memref<8x64xf32, #tpu.memory_space<vmem>>, vector<1x32xf32>
    %c4 = arith.constant 4 : index
    %c0_27 = arith.constant 0 : index
    %63 = vector.load %arg6[%c4, %c0_27] : memref<8x64xf32, #tpu.memory_space<vmem>>, vector<1x64xf32>
    %c5 = arith.constant 5 : index
    %c0_28 = arith.constant 0 : index
    %64 = vector.load %arg6[%c5, %c0_28] : memref<8x64xf32, #tpu.memory_space<vmem>>, vector<1x1xf32>
    %c0_29 = arith.constant 0 : index
    %c0_30 = arith.constant 0 : index
    %65 = vector.load %arg1[%c0_29, %c0_30] : memref<2x34xf32, #tpu.memory_space<vmem>>, vector<2x32xf32>
    %c0_31 = arith.constant 0 : index
    %c32_32 = arith.constant 32 : index
    %66 = vector.load %arg1[%c0_31, %c32_32] : memref<2x34xf32, #tpu.memory_space<vmem>>, vector<2x1xf32>
    %67 = vector.broadcast %66 : vector<2x1xf32> to vector<2x32xf32>
    %68 = vector.broadcast %59 : vector<1x32xf32> to vector<2x32xf32>
    %69 = arith.mulf %67, %68 : vector<2x32xf32>
    %70 = arith.addf %65, %69 : vector<2x32xf32>
    %c0_33 = arith.constant 0 : index
    %c33 = arith.constant 33 : index
    %71 = vector.load %arg1[%c0_33, %c33] : memref<2x34xf32, #tpu.memory_space<vmem>>, vector<2x1xf32>
    %72 = vector.broadcast %71 : vector<2x1xf32> to vector<2x32xf32>
    %73 = vector.broadcast %60 : vector<1x32xf32> to vector<2x32xf32>
    %74 = arith.mulf %72, %73 : vector<2x32xf32>
    %75 = arith.addf %70, %74 : vector<2x32xf32>
    %76 = vector.broadcast %61 : vector<1x32xf32> to vector<2x32xf32>
    %77 = arith.addf %75, %76 : vector<2x32xf32>
    %78 = arith.truncf %77 : vector<2x32xf32> to vector<2x32xbf16>
    %c0_34 = arith.constant 0 : index
    %c96 = arith.constant 96 : index
    %79 = vector.load %arg4[%c0_34, %c96] : memref<32x288xbf16, #tpu.memory_space<vmem>>, vector<32x32xbf16>
    %cst_35 = arith.constant dense<0.000000e+00> : vector<2x32xf32>
    %80 = tpu.matmul %78, %79, %cst_35 {dimension_numbers = #tpu.dot_dimension_numbers<[1], [0], [0], [1], [0, 0, 1, 1], [], []>} : vector<2x32xbf16>, vector<32x32xbf16>, vector<2x32xf32> -> vector<2x32xf32>
    %81 = arith.truncf %58 : vector<128x32xf32> to vector<128x32xbf16>
    %c0_36 = arith.constant 0 : index
    %c128 = arith.constant 128 : index
    %82 = vector.load %arg4[%c0_36, %c128] : memref<32x288xbf16, #tpu.memory_space<vmem>>, vector<32x64xbf16>
    %cst_37 = arith.constant dense<0.000000e+00> : vector<128x64xf32>
    %83 = tpu.matmul %81, %82, %cst_37 {dimension_numbers = #tpu.dot_dimension_numbers<[1], [0], [0], [1], [0, 0, 1, 1], [], []>} : vector<128x32xbf16>, vector<32x64xbf16>, vector<128x64xf32> -> vector<128x64xf32>
    %84 = vector.extract_strided_slice %83 {offsets = [0, 0], sizes = [128, 32], strides = [1, 1]} : vector<128x64xf32> to vector<128x32xf32>
    %c0_38 = arith.constant 0 : index
    %c128_39 = arith.constant 128 : index
    %85 = vector.load %arg2[%c0_38, %c128_39] : memref<128x160xf32, #tpu.memory_space<vmem>>, vector<128x32xf32>
    %86 = arith.addf %84, %85 : vector<128x32xf32>
    %87 = vector.extract_strided_slice %83 {offsets = [0, 32], sizes = [128, 32], strides = [1, 1]} : vector<128x64xf32> to vector<128x32xf32>
    %88 = tpu.iota {dimensions = array<i32: 0>} : vector<2x1xi32>
    %cst_40 = arith.constant 0.000000e+00 : f32
    %89 = vector.broadcast %cst_40 : f32 to vector<2x32xf32>
    %90 = vector.extract_strided_slice %86 {offsets = [0, 0], sizes = [64, 32], strides = [1, 1]} : vector<128x32xf32> to vector<64x32xf32>
    %91 = vector.extract_strided_slice %87 {offsets = [0, 0], sizes = [64, 32], strides = [1, 1]} : vector<128x32xf32> to vector<64x32xf32>
    %92 = vector.extract_strided_slice %80 {offsets = [0, 0], sizes = [1, 32], strides = [1, 1]} : vector<2x32xf32> to vector<1x32xf32>
    %93 = vector.broadcast %92 : vector<1x32xf32> to vector<64x32xf32>
    %94 = arith.mulf %90, %93 : vector<64x32xf32>
    %cst_41 = arith.constant dense<0.000000e+00> : vector<64xf32>
    %95 = vector.multi_reduction <add>, %94, %cst_41 [1] : vector<64x32xf32> to vector<64xf32>
    %96 = vector.shape_cast %95 : vector<64xf32> to vector<64x1xf32>
    %cst_42 = arith.constant dense<0xFF800000> : vector<1xf32>
    %97 = vector.multi_reduction <maximumf>, %96, %cst_42 [0] : vector<64x1xf32> to vector<1xf32>
    %98 = vector.shape_cast %97 : vector<1xf32> to vector<1x1xf32>
    %99 = vector.broadcast %98 : vector<1x1xf32> to vector<64x1xf32>
    %100 = arith.subf %96, %99 : vector<64x1xf32>
    %101 = math.exp %100 : vector<64x1xf32>
    %cst_43 = arith.constant dense<0.000000e+00> : vector<1xf32>
    %102 = vector.multi_reduction <add>, %101, %cst_43 [0] : vector<64x1xf32> to vector<1xf32>
    %103 = vector.shape_cast %102 : vector<1xf32> to vector<1x1xf32>
    %104 = tpu.reciprocal %103 {approx = true} : vector<1x1xf32> -> vector<1x1xf32>
    %105 = vector.broadcast %104 : vector<1x1xf32> to vector<64x1xf32>
    %106 = arith.mulf %101, %105 : vector<64x1xf32>
    %107 = vector.broadcast %106 : vector<64x1xf32> to vector<64x32xf32>
    %108 = arith.mulf %107, %91 : vector<64x32xf32>
    %cst_44 = arith.constant dense<0.000000e+00> : vector<32xf32>
    %109 = vector.multi_reduction <add>, %108, %cst_44 [0] : vector<64x32xf32> to vector<32xf32>
    %110 = vector.shape_cast %109 : vector<32xf32> to vector<1x32xf32>
    %c0_i32 = arith.constant 0 : i32
    %111 = vector.broadcast %c0_i32 : i32 to vector<2x1xi32>
    %112 = arith.cmpi eq, %88, %111 : vector<2x1xi32>
    %113 = arith.extui %112 : vector<2x1xi1> to vector<2x1xi32>
    %114 = arith.sitofp %113 : vector<2x1xi32> to vector<2x1xf32>
    %115 = vector.broadcast %114 : vector<2x1xf32> to vector<2x32xf32>
    %116 = vector.broadcast %110 : vector<1x32xf32> to vector<2x32xf32>
    %117 = arith.mulf %115, %116 : vector<2x32xf32>
    %118 = arith.addf %89, %117 : vector<2x32xf32>
    %119 = vector.extract_strided_slice %86 {offsets = [64, 0], sizes = [64, 32], strides = [1, 1]} : vector<128x32xf32> to vector<64x32xf32>
    %120 = vector.extract_strided_slice %87 {offsets = [64, 0], sizes = [64, 32], strides = [1, 1]} : vector<128x32xf32> to vector<64x32xf32>
    %121 = vector.extract_strided_slice %80 {offsets = [1, 0], sizes = [1, 32], strides = [1, 1]} : vector<2x32xf32> to vector<1x32xf32>
    %122 = vector.broadcast %121 : vector<1x32xf32> to vector<64x32xf32>
    %123 = arith.mulf %119, %122 : vector<64x32xf32>
    %cst_45 = arith.constant dense<0.000000e+00> : vector<64xf32>
    %124 = vector.multi_reduction <add>, %123, %cst_45 [1] : vector<64x32xf32> to vector<64xf32>
    %125 = vector.shape_cast %124 : vector<64xf32> to vector<64x1xf32>
    %cst_46 = arith.constant dense<0xFF800000> : vector<1xf32>
    %126 = vector.multi_reduction <maximumf>, %125, %cst_46 [0] : vector<64x1xf32> to vector<1xf32>
    %127 = vector.shape_cast %126 : vector<1xf32> to vector<1x1xf32>
    %128 = vector.broadcast %127 : vector<1x1xf32> to vector<64x1xf32>
    %129 = arith.subf %125, %128 : vector<64x1xf32>
    %130 = math.exp %129 : vector<64x1xf32>
    %cst_47 = arith.constant dense<0.000000e+00> : vector<1xf32>
    %131 = vector.multi_reduction <add>, %130, %cst_47 [0] : vector<64x1xf32> to vector<1xf32>
    %132 = vector.shape_cast %131 : vector<1xf32> to vector<1x1xf32>
    %133 = tpu.reciprocal %132 {approx = true} : vector<1x1xf32> -> vector<1x1xf32>
    %134 = vector.broadcast %133 : vector<1x1xf32> to vector<64x1xf32>
    %135 = arith.mulf %130, %134 : vector<64x1xf32>
    %136 = vector.broadcast %135 : vector<64x1xf32> to vector<64x32xf32>
    %137 = arith.mulf %136, %120 : vector<64x32xf32>
    %cst_48 = arith.constant dense<0.000000e+00> : vector<32xf32>
    %138 = vector.multi_reduction <add>, %137, %cst_48 [0] : vector<64x32xf32> to vector<32xf32>
    %139 = vector.shape_cast %138 : vector<32xf32> to vector<1x32xf32>
    %c1_i32 = arith.constant 1 : i32
    %140 = vector.broadcast %c1_i32 : i32 to vector<2x1xi32>
    %141 = arith.cmpi eq, %88, %140 : vector<2x1xi32>
    %142 = arith.extui %141 : vector<2x1xi1> to vector<2x1xi32>
    %143 = arith.sitofp %142 : vector<2x1xi32> to vector<2x1xf32>
    %144 = vector.broadcast %143 : vector<2x1xf32> to vector<2x32xf32>
    %145 = vector.broadcast %139 : vector<1x32xf32> to vector<2x32xf32>
    %146 = arith.mulf %144, %145 : vector<2x32xf32>
    %147 = arith.addf %118, %146 : vector<2x32xf32>
    %148 = arith.truncf %147 : vector<2x32xf32> to vector<2x32xbf16>
    %c0_49 = arith.constant 0 : index
    %c192 = arith.constant 192 : index
    %149 = vector.load %arg4[%c0_49, %c192] : memref<32x288xbf16, #tpu.memory_space<vmem>>, vector<32x32xbf16>
    %cst_50 = arith.constant dense<0.000000e+00> : vector<2x32xf32>
    %150 = tpu.matmul %148, %149, %cst_50 {dimension_numbers = #tpu.dot_dimension_numbers<[1], [0], [0], [1], [0, 0, 1, 1], [], []>} : vector<2x32xbf16>, vector<32x32xbf16>, vector<2x32xf32> -> vector<2x32xf32>
    %151 = arith.addf %77, %150 : vector<2x32xf32>
    %152 = arith.truncf %151 : vector<2x32xf32> to vector<2x32xbf16>
    %c0_51 = arith.constant 0 : index
    %c224 = arith.constant 224 : index
    %153 = vector.load %arg4[%c0_51, %c224] : memref<32x288xbf16, #tpu.memory_space<vmem>>, vector<32x64xbf16>
    %cst_52 = arith.constant dense<0.000000e+00> : vector<2x64xf32>
    %154 = tpu.matmul %152, %153, %cst_52 {dimension_numbers = #tpu.dot_dimension_numbers<[1], [0], [0], [1], [0, 0, 1, 1], [], []>} : vector<2x32xbf16>, vector<32x64xbf16>, vector<2x64xf32> -> vector<2x64xf32>
    %cst_53 = arith.constant 0.000000e+00 : f32
    %155 = vector.broadcast %cst_53 : f32 to vector<2x64xf32>
    %156 = arith.maximumf %154, %155 : vector<2x64xf32>
    %157 = vector.broadcast %62 : vector<1x32xf32> to vector<2x32xf32>
    %158 = arith.mulf %151, %157 : vector<2x32xf32>
    %cst_54 = arith.constant dense<0.000000e+00> : vector<2xf32>
    %159 = vector.multi_reduction <add>, %158, %cst_54 [1] : vector<2x32xf32> to vector<2xf32>
    %160 = vector.shape_cast %159 : vector<2xf32> to vector<2x1xf32>
    %161 = vector.broadcast %63 : vector<1x64xf32> to vector<2x64xf32>
    %162 = arith.mulf %156, %161 : vector<2x64xf32>
    %cst_55 = arith.constant dense<0.000000e+00> : vector<2xf32>
    %163 = vector.multi_reduction <add>, %162, %cst_55 [1] : vector<2x64xf32> to vector<2xf32>
    %164 = vector.shape_cast %163 : vector<2xf32> to vector<2x1xf32>
    %165 = arith.addf %160, %164 : vector<2x1xf32>
    %166 = vector.broadcast %64 : vector<1x1xf32> to vector<2x1xf32>
    %167 = arith.addf %165, %166 : vector<2x1xf32>
    %168 = vector.shape_cast %167 : vector<2x1xf32> to vector<2x1xf32>
    %169 = vector.broadcast %168 : vector<2x1xf32> to vector<2x128xf32>
    %c0_56 = arith.constant 0 : index
    %c0_57 = arith.constant 0 : index
    %170 = vector.load %arg7[%c0_56, %c0_57] : memref<2x128xf32, #tpu.memory_space<vmem>>, vector<2x128xf32>
    tpu.vector_store %arg7[%c0_56, %c0_57], %169 {strides = array<i32>} : memref<2x128xf32, #tpu.memory_space<vmem>>, vector<2x128xf32>,
    return
  }
}

</mosaic_0001>

<llo_original>
// kernel: tramap_forward.1
$region0: #{tramap_forward.1}
  #allocation0 [shape = 'u32[]', space=smem, size = 0x4, offset = 0x4, fixed_abs, tag = 'smem constant byte address 0x4 - core index']
  #allocation1 [shape = 'u32[144,128]{1,0:T(1,128)}', space=vmem, size = 0x12000, scoped, tag = 'internal scratch']
  %s0 = inlined_call_operand.vmem [shape: bf16[128,4], index: 0, kind: input, shape index: {}]
  %s1 = inlined_call_operand.vmem [shape: f32[2,34], index: 1, kind: input, shape index: {}]
  %s2 = inlined_call_operand.vmem [shape: f32[128,160], index: 2, kind: input, shape index: {}]
  %s3 = inlined_call_operand.vmem [shape: bf16[4,128], index: 3, kind: input, shape index: {}]
  %s4 = inlined_call_operand.vmem [shape: bf16[32,288], index: 4, kind: input, shape index: {}]
  %s5 = inlined_call_operand.vmem [shape: bf16[64,32], index: 5, kind: input, shape index: {}]
  %s6 = inlined_call_operand.vmem [shape: f32[8,64], index: 6, kind: input, shape index: {}]
  %s7 = inlined_call_operand.vmem [shape: f32[2,128], index: 7, kind: output, shape index: {}]
  %s8 = sld [smem:[#allocation0]]
  $region38: #{tramap_forward.1} parent=0
    _
  %s10 = ssub.s32 1, %s8
  %s11 = scalar_select 0, %s10, %s8
  // Predicated region
  $region2: #{tramap_forward.1} parent=0 // pred_check
    _
  $region3: #{tramap_forward.1} parent=0 // pred_check_branch
    %13 = sbr.rel (0) target = $region5
  $region4: #{tramap_forward.1} parent=0 // pred_region
    _
  $region5: #{tramap_forward.1} parent=0 // pred_fallthru
    _
  // Predicated region
  $region6: #{tramap_forward.1} parent=0 // pred_check
    _
  $region7: #{tramap_forward.1} parent=0 // pred_check_branch
    %15 = sbr.rel (0) target = $region9
  $region8: #{tramap_forward.1} parent=0 // pred_region
    _
  $region9: #{tramap_forward.1} parent=0 // pred_fallthru
    _
  // Predicated region
  $region10: #{tramap_forward.1} parent=0 // pred_check
    _
  $region11: #{tramap_forward.1} parent=0 // pred_check_branch
    %17 = sbr.rel (0) target = $region13
  $region12: #{tramap_forward.1} parent=0 // pred_region
    _
  $region13: #{tramap_forward.1} parent=0 // pred_fallthru
    _
  // Predicated region
  $region14: #{tramap_forward.1} parent=0 // pred_check
    _
  $region15: #{tramap_forward.1} parent=0 // pred_check_branch
    %19 = sbr.rel (0) target = $region17
  $region16: #{tramap_forward.1} parent=0 // pred_region
    _
  $region17: #{tramap_forward.1} parent=0 // pred_fallthru
    _
  // Predicated region
  $region18: #{tramap_forward.1} parent=0 // pred_check
    _
  $region19: #{tramap_forward.1} parent=0 // pred_check_branch
    %21 = sbr.rel (0) target = $region21
  $region20: #{tramap_forward.1} parent=0 // pred_region
    _
  $region21: #{tramap_forward.1} parent=0 // pred_fallthru
    _
  // Predicated region
  $region22: #{tramap_forward.1} parent=0 // pred_check
    _
  $region23: #{tramap_forward.1} parent=0 // pred_check_branch
    %23 = sbr.rel (0) target = $region25
  $region24: #{tramap_forward.1} parent=0 // pred_region
    _
  $region25: #{tramap_forward.1} parent=0 // pred_fallthru
    _
  // Predicated region
  $region26: #{tramap_forward.1} parent=0 // pred_check
    _
  $region27: #{tramap_forward.1} parent=0 // pred_check_branch
    %25 = sbr.rel (0) target = $region29
  $region28: #{tramap_forward.1} parent=0 // pred_region
    _
  $region29: #{tramap_forward.1} parent=0 // pred_fallthru
    _
  %v27 = vld [vmem:[%s0] sm:$0xf]
  %v28 = vld [vmem:[%s0 + $0x4] sm:$0xf]
  %v29 = vld [vmem:[%s0 + $0x8] sm:$0xf]
  %v30 = vld [vmem:[%s0 + $0xc] sm:$0xf]
  %v31 = vld [vmem:[%s0 + $0x10] sm:$0xf]
  %v32 = vld [vmem:[%s0 + $0x14] sm:$0xf]
  %v33 = vld [vmem:[%s0 + $0x18] sm:$0xf]
  %v34 = vld [vmem:[%s0 + $0x1c] sm:$0xf]
  %v35 = vld [vmem:[%s0 + $0x20] sm:$0xf]
  %v36 = vld [vmem:[%s0 + $0x24] sm:$0xf]
  %v37 = vld [vmem:[%s0 + $0x28] sm:$0xf]
  %v38 = vld [vmem:[%s0 + $0x2c] sm:$0xf]
  %v39 = vld [vmem:[%s0 + $0x30] sm:$0xf]
  %v40 = vld [vmem:[%s0 + $0x34] sm:$0xf]
  %v41 = vld [vmem:[%s0 + $0x38] sm:$0xf]
  %v42 = vld [vmem:[%s0 + $0x3c] sm:$0xf]
  %v43 = vld [vmem:[%s3] sm:$0x3]
  %v44 = vld [vmem:[%s2] sm:$0xff]
  %v45 = vld [vmem:[%s2 + $0x10] sm:$0xff]
  %v46 = vld [vmem:[%s2 + $0x20] sm:$0xff]
  %v47 = vld [vmem:[%s2 + $0x30] sm:$0xff]
  %v48 = vld [vmem:[%s2 + $0x40] sm:$0xff]
  %v49 = vld [vmem:[%s2 + $0x50] sm:$0xff]
  %v50 = vld [vmem:[%s2 + $0x60] sm:$0xff]
  %v51 = vld [vmem:[%s2 + $0x70] sm:$0xff]
  %v52 = vld [vmem:[%s2 + $0x80] sm:$0xff]
  %v53 = vld [vmem:[%s2 + $0x90] sm:$0xff]
  %v54 = vld [vmem:[%s2 + $0xa0] sm:$0xff]
  %v55 = vld [vmem:[%s2 + $0xb0] sm:$0xff]
  %v56 = vld [vmem:[%s2 + $0xc0] sm:$0xff]
  %v57 = vld [vmem:[%s2 + $0xd0] sm:$0xff]
  %v58 = vld [vmem:[%s2 + $0xe0] sm:$0xff]
  %v59 = vld [vmem:[%s2 + $0xf0] sm:$0xff]
  %v76 = vunpack.c.l.b16 %v27
  %v77 = vunpack.c.l.b16 %v28
  %v78 = vunpack.c.l.b16 %v29
  %v79 = vunpack.c.l.b16 %v30
  %v80 = vunpack.c.l.b16 %v31
  %v81 = vunpack.c.l.b16 %v32
  %v82 = vunpack.c.l.b16 %v33
  %v83 = vunpack.c.l.b16 %v34
  %v84 = vunpack.c.l.b16 %v35
  %v85 = vunpack.c.l.b16 %v36
  %v86 = vunpack.c.l.b16 %v37
  %v87 = vunpack.c.l.b16 %v38
  %v88 = vunpack.c.l.b16 %v39
  %v89 = vunpack.c.l.b16 %v40
  %v90 = vunpack.c.l.b16 %v41
  %v91 = vunpack.c.l.b16 %v42
  %v92 = vpack.c.b16 %v77, %v76
  %v93 = vpack.c.b16 %v79, %v78
  %v94 = vpack.c.b16 %v81, %v80
  %v95 = vpack.c.b16 %v83, %v82
  %v96 = vpack.c.b16 %v85, %v84
  %v97 = vpack.c.b16 %v87, %v86
  %v98 = vpack.c.b16 %v89, %v88
  %v99 = vpack.c.b16 %v91, %v90
  %vm100 = vcmask 31744
  %v102 = vsel %vm100, %v92, 0
  %v105 = vsel %vm100, %v93, 0
  %v108 = vsel %vm100, %v94, 0
  %v111 = vsel %vm100, %v95, 0
  %v114 = vsel %vm100, %v96, 0
  %v117 = vsel %vm100, %v97, 0
  %v120 = vsel %vm100, %v98, 0
  %v123 = vsel %vm100, %v99, 0
  %vm125 = vcmask 1041408
  %v127 = vsel %vm125, %v43, 0
  %129 = vmatprep.subr.bf16.mxu0 0
  %130 = vmatpush1.bf16.msra.mxu0 0
  %131 = vmatprep.subr.bf16.mxu0 0
  %132 = vmatpush1.bf16.msra.mxu0 0
  %133 = vmatprep.subr.bf16.mxu0 0
  %134 = vmatpush1.bf16.msra.mxu0 0
  %135 = vmatprep.subr.bf16.mxu0 0
  %136 = vmatpush1.bf16.msra.mxu0 0
  %137 = vmatprep.subr.bf16.mxu0 0
  %138 = vmatpush1.bf16.msra.mxu0 0
  %139 = vmatprep.subr.bf16.mxu0 0
  %140 = vmatpush1.bf16.msra.mxu0 0
  %141 = vmatprep.subr.bf16.mxu0 0
  %142 = vmatpush1.bf16.msra.mxu0 0
  %143 = vmatprep.subr.bf16.mxu0 0
  %144 = vmatpush1.bf16.msra.mxu0 %v127
  %145 = vmatprep.subr.bf16.mxu0 0
  %146 = vmatpush2.bf16.msra.mxu0 0
  %147 = vmatprep.subr.bf16.mxu0 0
  %148 = vmatpush2.bf16.msra.mxu0 0
  %149 = vmatprep.subr.bf16.mxu0 0
  %150 = vmatpush2.bf16.msra.mxu0 0
  %151 = vmatprep.subr.bf16.mxu0 0
  %152 = vmatpush2.bf16.msra.mxu0 0
  %153 = vmatprep.subr.bf16.mxu0 0
  %154 = vmatpush2.bf16.msra.mxu0 0
  %155 = vmatprep.subr.bf16.mxu0 0
  %156 = vmatpush2.bf16.msra.mxu0 0
  %157 = vmatprep.subr.bf16.mxu0 0
  %158 = vmatpush2.bf16.msra.mxu0 0
  %159 = vmatprep.subr.bf16.mxu0 0
  %160 = vmatpush2.bf16.msra.mxu0 0
  %161 = vmatprep.mubr.bf16.mxu0 0
  %162 = vmatmul.mubr.bf16.gmra.mxu0 %v102
  %v163 = vpop.f32.mrf.mxu0
  %v164 = vadd.f32 %v44, %v163
  %v165 = vpop.f32.mrf.mxu0
  %v166 = vpop.f32.mrf.mxu0
  %v167 = vadd.f32 %v45, %v166
  %v168 = vpop.f32.mrf.mxu0
  %169 = vmatprep.mubr.bf16.mxu0 0
  %170 = vmatmul.mubr.bf16.gmra.mxu0 %v105
  %v171 = vpop.f32.mrf.mxu0
  %v172 = vadd.f32 %v46, %v171
  %v173 = vpop.f32.mrf.mxu0
  %v174 = vpop.f32.mrf.mxu0
  %v175 = vadd.f32 %v47, %v174
  %v176 = vpop.f32.mrf.mxu0
  %177 = vmatprep.mubr.bf16.mxu0 0
  %178 = vmatmul.mubr.bf16.gmra.mxu0 %v108
  %v179 = vpop.f32.mrf.mxu0
  %v180 = vadd.f32 %v48, %v179
  %v181 = vpop.f32.mrf.mxu0
  %v182 = vpop.f32.mrf.mxu0
  %v183 = vadd.f32 %v49, %v182
  %v184 = vpop.f32.mrf.mxu0
  %185 = vmatprep.mubr.bf16.mxu0 0
  %186 = vmatmul.mubr.bf16.gmra.mxu0 %v111
  %v187 = vpop.f32.mrf.mxu0
  %v188 = vadd.f32 %v50, %v187
  %v189 = vpop.f32.mrf.mxu0
  %v190 = vpop.f32.mrf.mxu0
  %v191 = vadd.f32 %v51, %v190
  %v192 = vpop.f32.mrf.mxu0
  %193 = vmatprep.mubr.bf16.mxu0 0
  %194 = vmatmul.mubr.bf16.gmra.mxu0 %v114
  %v195 = vpop.f32.mrf.mxu0
  %v196 = vadd.f32 %v52, %v195
  %v197 = vpop.f32.mrf.mxu0
  %v198 = vpop.f32.mrf.mxu0
  %v199 = vadd.f32 %v53, %v198
  %v200 = vpop.f32.mrf.mxu0
  %201 = vmatprep.mubr.bf16.mxu0 0
  %202 = vmatmul.mubr.bf16.gmra.mxu0 %v117
  %v203 = vpop.f32.mrf.mxu0
  %v204 = vadd.f32 %v54, %v203
  %v205 = vpop.f32.mrf.mxu0
  %v206 = vpop.f32.mrf.mxu0
  %v207 = vadd.f32 %v55, %v206
  %v208 = vpop.f32.mrf.mxu0
  %209 = vmatprep.mubr.bf16.mxu0 0
  %210 = vmatmul.mubr.bf16.gmra.mxu0 %v120
  %v211 = vpop.f32.mrf.mxu0
  %v212 = vadd.f32 %v56, %v211
  %v213 = vpop.f32.mrf.mxu0
  %v214 = vpop.f32.mrf.mxu0
  %v215 = vadd.f32 %v57, %v214
  %v216 = vpop.f32.mrf.mxu0
  %217 = vmatprep.mubr.bf16.mxu0 0
  %218 = vmatmul.mubr.bf16.gmra.mxu0 %v123
  %v219 = vpop.f32.mrf.mxu0
  %v220 = vadd.f32 %v58, %v219
  %v221 = vpop.f32.mrf.mxu0
  %v222 = vpop.f32.mrf.mxu0
  %v223 = vadd.f32 %v59, %v222
  %v224 = vpop.f32.mrf.mxu0
  %225 = vdwg.mxu0
  %v226 = vpack.c.bf16 %v167, %v164
  %v227 = vpack.c.bf16 %v175, %v172
  %v228 = vpack.c.bf16 %v183, %v180
  %v229 = vpack.c.bf16 %v191, %v188
  %v230 = vpack.c.bf16 %v199, %v196
  %v231 = vpack.c.bf16 %v207, %v204
  %v232 = vpack.c.bf16 %v215, %v212
  %v233 = vpack.c.bf16 %v223, %v220
  %238 = vrot.lane.b32.xlu0 %v226, 96
  %v239 = vpop.permute.xlu0 %238
  %240 = vrot.lane.b32.xlu0 %v227, 96
  %v241 = vpop.permute.xlu0 %240
  %242 = vrot.lane.b32.xlu0 %v228, 96
  %v243 = vpop.permute.xlu0 %242
  %244 = vrot.lane.b32.xlu0 %v229, 96
  %v245 = vpop.permute.xlu0 %244
  %246 = vrot.lane.b32.xlu0 %v226, 64
  %v247 = vpop.permute.xlu0 %246
  %248 = vrot.lane.b32.xlu0 %v227, 64
  %v249 = vpop.permute.xlu0 %248
  %250 = vrot.lane.b32.xlu0 %v228, 64
  %v251 = vpop.permute.xlu0 %250
  %252 = vrot.lane.b32.xlu0 %v229, 64
  %v253 = vpop.permute.xlu0 %252
  %vm254 = vcmask 261120
  %v256 = vsel %vm254, %v239, 0
  %v259 = vsel %vm254, %v241, 0
  %v262 = vsel %vm254, %v243, 0
  %v265 = vsel %vm254, %v245, 0
  %v268 = vsel %vm254, %v247, 0
  %v271 = vsel %vm254, %v249, 0
  %v274 = vsel %vm254, %v251, 0
  %v277 = vsel %vm254, %v253, 0
  %279 = vmatprep.subr.bf16.mxu0 0
  %280 = vmatpush1.bf16.xpose.msra.mxu0 0
  %281 = vmatprep.subr.bf16.mxu0 0
  %282 = vmatpush1.bf16.xpose.msra.mxu0 0
  %283 = vmatprep.subr.bf16.mxu0 0
  %284 = vmatpush1.bf16.xpose.msra.mxu0 0
  %285 = vmatprep.subr.bf16.mxu0 0
  %286 = vmatpush1.bf16.xpose.msra.mxu0 0
  %287 = vmatprep.subr.bf16.mxu0 0
  %288 = vmatpush1.bf16.xpose.msra.mxu0 %v277
  %289 = vmatprep.subr.bf16.mxu0 0
  %290 = vmatpush1.bf16.xpose.msra.mxu0 %v274
  %291 = vmatprep.subr.bf16.mxu0 0
  %292 = vmatpush1.bf16.xpose.msra.mxu0 %v271
  %293 = vmatprep.subr.bf16.mxu0 0
  %294 = vmatpush1.bf16.xpose.msra.mxu0 %v268
  %295 = vmatprep.subr.bf16.mxu0 0
  %296 = vmatpush2.bf16.xpose.msra.mxu0 0
  %297 = vmatprep.subr.bf16.mxu0 0
  %298 = vmatpush2.bf16.xpose.msra.mxu0 0
  %299 = vmatprep.subr.bf16.mxu0 0
  %300 = vmatpush2.bf16.xpose.msra.mxu0 0
  %301 = vmatprep.subr.bf16.mxu0 0
  %302 = vmatpush2.bf16.xpose.msra.mxu0 0
  %303 = vmatprep.subr.bf16.mxu0 0
  %304 = vmatpush2.bf16.xpose.msra.mxu0 0
  %305 = vmatprep.subr.bf16.mxu0 0
  %306 = vmatpush2.bf16.xpose.msra.mxu0 0
  %307 = vmatprep.subr.bf16.mxu0 0
  %308 = vmatpush2.bf16.xpose.msra.mxu0 0
  %309 = vmatprep.subr.bf16.mxu0 0
  %310 = vmatpush2.bf16.xpose.msra.mxu0 0
  %311 = vmatprep.mubr.bf16.mxu0 0
  %312 = vmatmul.mubr.bf16.gmra.mxu0 %v256
  %v313 = vpop.f32.mrf.mxu0
  %v314 = vadd.f32 0.0, %v313
  %v315 = vpop.f32.mrf.mxu0
  %v316 = vpop.f32.mrf.mxu0
  %v317 = vadd.f32 0.0, %v316
  %v318 = vpop.f32.mrf.mxu0
  %319 = vmatprep.mubr.bf16.mxu0 0
  %320 = vmatmul.mubr.bf16.gmra.mxu0 %v259
  %v321 = vpop.f32.mrf.mxu0
  %v322 = vadd.f32 0.0, %v321
  %v323 = vpop.f32.mrf.mxu0
  %v324 = vpop.f32.mrf.mxu0
  %v325 = vadd.f32 0.0, %v324
  %v326 = vpop.f32.mrf.mxu0
  %327 = vmatprep.mubr.bf16.mxu0 0
  %328 = vmatmul.mubr.bf16.gmra.mxu0 %v262
  %v329 = vpop.f32.mrf.mxu0
  %v330 = vadd.f32 0.0, %v329
  %v331 = vpop.f32.mrf.mxu0
  %v332 = vpop.f32.mrf.mxu0
  %v333 = vadd.f32 0.0, %v332
  %v334 = vpop.f32.mrf.mxu0
  %335 = vmatprep.mubr.bf16.mxu0 0
  %336 = vmatmul.mubr.bf16.gmra.mxu0 %v265
  %v337 = vpop.f32.mrf.mxu0
  %v338 = vadd.f32 0.0, %v337
  %v339 = vpop.f32.mrf.mxu0
  %v340 = vpop.f32.mrf.mxu0
  %v341 = vadd.f32 0.0, %v340
  %v342 = vpop.f32.mrf.mxu0
  %343 = vdwg.mxu0
  %vm344 = vcmask 523264
  %v345 = vsel %vm344, %v314, -inf
  %346 = vmax.xlane.f32.xlu0 %v345
  %v347 = vpop.xlane.xlu0 %346
  %v348 = vsel %vm344, %v317, -inf
  %349 = vmax.xlane.f32.xlu0 %v348
  %v350 = vpop.xlane.xlu0 %349
  %v351 = vsel %vm344, %v322, -inf
  %352 = vmax.xlane.f32.xlu0 %v351
  %v353 = vpop.xlane.xlu0 %352
  %v354 = vsel %vm344, %v325, -inf
  %355 = vmax.xlane.f32.xlu0 %v354
  %v356 = vpop.xlane.xlu0 %355
  %v357 = vsel %vm344, %v330, -inf
  %358 = vmax.xlane.f32.xlu0 %v357
  %v359 = vpop.xlane.xlu0 %358
  %v360 = vsel %vm344, %v333, -inf
  %361 = vmax.xlane.f32.xlu0 %v360
  %v362 = vpop.xlane.xlu0 %361
  %v363 = vsel %vm344, %v338, -inf
  %364 = vmax.xlane.f32.xlu0 %v363
  %v365 = vpop.xlane.xlu0 %364
  %v366 = vsel %vm344, %v341, -inf
  %367 = vmax.xlane.f32.xlu0 %v366
  %v368 = vpop.xlane.xlu0 %367
  %v369 = vsub.f32 %v314, %v347
  %v370 = vsub.f32 %v317, %v350
  %v371 = vsub.f32 %v322, %v353
  %v372 = vsub.f32 %v325, %v356
  %v373 = vsub.f32 %v330, %v359
  %v374 = vsub.f32 %v333, %v362
  %v375 = vsub.f32 %v338, %v365
  %v376 = vsub.f32 %v341, %v368
  %v377 = vmul.f32 %v369, 1.442695
  %v378 = vpow.pop %v377
  %v379 = vmul.f32 %v370, 1.442695
  %v380 = vpow.pop %v379
  %v381 = vmul.f32 %v371, 1.442695
  %v382 = vpow.pop %v381
  %v383 = vmul.f32 %v372, 1.442695
  %v384 = vpow.pop %v383
  %v385 = vmul.f32 %v373, 1.442695
  %v386 = vpow.pop %v385
  %v387 = vmul.f32 %v374, 1.442695
  %v388 = vpow.pop %v387
  %v389 = vmul.f32 %v375, 1.442695
  %v390 = vpow.pop %v389
  %v391 = vmul.f32 %v376, 1.442695
  %v392 = vpow.pop %v391
  %v393 = vsel %vm344, %v378, 0.0
  %394 = vadd.xlane.f32.xlu0 %v393
  %v395 = vpop.xlane.xlu0 %394
  %v396 = vsel %vm344, %v380, 0.0
  %397 = vadd.xlane.f32.xlu0 %v396
  %v398 = vpop.xlane.xlu0 %397
  %v399 = vsel %vm344, %v382, 0.0
  %400 = vadd.xlane.f32.xlu0 %v399
  %v401 = vpop.xlane.xlu0 %400
  %v402 = vsel %vm344, %v384, 0.0
  %403 = vadd.xlane.f32.xlu0 %v402
  %v404 = vpop.xlane.xlu0 %403
  %v405 = vsel %vm344, %v386, 0.0
  %406 = vadd.xlane.f32.xlu0 %v405
  %v407 = vpop.xlane.xlu0 %406
  %v408 = vsel %vm344, %v388, 0.0
  %409 = vadd.xlane.f32.xlu0 %v408
  %v410 = vpop.xlane.xlu0 %409
  %v411 = vsel %vm344, %v390, 0.0
  %412 = vadd.xlane.f32.xlu0 %v411
  %v413 = vpop.xlane.xlu0 %412
  %v414 = vsel %vm344, %v392, 0.0
  %415 = vadd.xlane.f32.xlu0 %v414
  %v416 = vpop.xlane.xlu0 %415
  %v417 = vrcp.pop %v395
  %v418 = vrcp.pop %v398
  %v419 = vrcp.pop %v401
  %v420 = vrcp.pop %v404
  %v421 = vrcp.pop %v407
  %v422 = vrcp.pop %v410
  %v423 = vrcp.pop %v413
  %v424 = vrcp.pop %v416
  %v425 = vmul.f32 %v378, %v417
  %v426 = vmul.f32 %v380, %v418
  %v427 = vmul.f32 %v382, %v419
  %v428 = vmul.f32 %v384, %v420
  %v429 = vmul.f32 %v386, %v421
  %v430 = vmul.f32 %v388, %v422
  %v431 = vmul.f32 %v390, %v423
  %v432 = vmul.f32 %v392, %v424
  %v433 = vpack.c.bf16 %v426, %v425
  %v434 = vpack.c.bf16 %v428, %v427
  %v435 = vpack.c.bf16 %v430, %v429
  %v436 = vpack.c.bf16 %v432, %v431
  %437 = vrot.lane.b32.xlu0 %v226, 32
  %v438 = vpop.permute.xlu0 %437
  %439 = vrot.lane.b32.xlu0 %v227, 32
  %v440 = vpop.permute.xlu0 %439
  %441 = vrot.lane.b32.xlu0 %v228, 32
  %v442 = vpop.permute.xlu0 %441
  %443 = vrot.lane.b32.xlu0 %v229, 32
  %v444 = vpop.permute.xlu0 %443
  %v450 = vsel %vm344, %v433, 0
  %v453 = vsel %vm344, %v434, 0
  %v456 = vsel %vm344, %v435, 0
  %v459 = vsel %vm344, %v436, 0
  %461 = vmatprep.subr.bf16.mxu0 0
  %462 = vmatpush1.bf16.msra.mxu0 0
  %463 = vmatprep.subr.bf16.mxu0 0
  %464 = vmatpush1.bf16.msra.mxu0 0
  %465 = vmatprep.subr.bf16.mxu0 0
  %466 = vmatpush1.bf16.msra.mxu0 0
  %467 = vmatprep.subr.bf16.mxu0 0
  %468 = vmatpush1.bf16.msra.mxu0 0
  %469 = vmatprep.subr.bf16.mxu0 0
  %470 = vmatpush1.bf16.msra.mxu0 %v444
  %471 = vmatprep.subr.bf16.mxu0 0
  %472 = vmatpush1.bf16.msra.mxu0 %v442
  %473 = vmatprep.subr.bf16.mxu0 0
  %474 = vmatpush1.bf16.msra.mxu0 %v440
  %475 = vmatprep.subr.bf16.mxu0 0
  %476 = vmatpush1.bf16.msra.mxu0 %v438
  %477 = vmatprep.subr.bf16.mxu0 0
  %478 = vmatpush2.bf16.msra.mxu0 0
  %479 = vmatprep.subr.bf16.mxu0 0
  %480 = vmatpush2.bf16.msra.mxu0 0
  %481 = vmatprep.subr.bf16.mxu0 0
  %482 = vmatpush2.bf16.msra.mxu0 0
  %483 = vmatprep.subr.bf16.mxu0 0
  %484 = vmatpush2.bf16.msra.mxu0 0
  %485 = vmatprep.subr.bf16.mxu0 0
  %486 = vmatpush2.bf16.msra.mxu0 0
  %487 = vmatprep.subr.bf16.mxu0 0
  %488 = vmatpush2.bf16.msra.mxu0 0
  %489 = vmatprep.subr.bf16.mxu0 0
  %490 = vmatpush2.bf16.msra.mxu0 0
  %491 = vmatprep.subr.bf16.mxu0 0
  %492 = vmatpush2.bf16.msra.mxu0 0
  %493 = vmatprep.mubr.bf16.mxu0 0
  %494 = vmatmul.mubr.bf16.gmra.mxu0 %v450
  %v495 = vpop.f32.mrf.mxu0
  %v496 = vadd.f32 0.0, %v495
  %v497 = vpop.f32.mrf.mxu0
  %v498 = vpop.f32.mrf.mxu0
  %v499 = vadd.f32 0.0, %v498
  %v500 = vpop.f32.mrf.mxu0
  %501 = vmatprep.mubr.bf16.mxu0 0
  %502 = vmatmul.mubr.bf16.gmra.mxu0 %v453
  %v503 = vpop.f32.mrf.mxu0
  %v504 = vadd.f32 0.0, %v503
  %v505 = vpop.f32.mrf.mxu0
  %v506 = vpop.f32.mrf.mxu0
  %v507 = vadd.f32 0.0, %v506
  %v508 = vpop.f32.mrf.mxu0
  %509 = vmatprep.mubr.bf16.mxu0 0
  %510 = vmatmul.mubr.bf16.gmra.mxu0 %v456
  %v511 = vpop.f32.mrf.mxu0
  %v512 = vadd.f32 0.0, %v511
  %v513 = vpop.f32.mrf.mxu0
  %v514 = vpop.f32.mrf.mxu0
  %v515 = vadd.f32 0.0, %v514
  %v516 = vpop.f32.mrf.mxu0
  %517 = vmatprep.mubr.bf16.mxu0 0
  %518 = vmatmul.mubr.bf16.gmra.mxu0 %v459
  %v519 = vpop.f32.mrf.mxu0
  %v520 = vadd.f32 0.0, %v519
  %v521 = vpop.f32.mrf.mxu0
  %v522 = vpop.f32.mrf.mxu0
  %v523 = vadd.f32 0.0, %v522
  %v524 = vpop.f32.mrf.mxu0
  %525 = vdwg.mxu0
  %530 = vrot.lane.b32.xlu0 %v230, 96
  %v531 = vpop.permute.xlu0 %530
  %532 = vrot.lane.b32.xlu0 %v231, 96
  %v533 = vpop.permute.xlu0 %532
  %534 = vrot.lane.b32.xlu0 %v232, 96
  %v535 = vpop.permute.xlu0 %534
  %536 = vrot.lane.b32.xlu0 %v233, 96
  %v537 = vpop.permute.xlu0 %536
  %538 = vrot.lane.b32.xlu0 %v230, 64
  %v539 = vpop.permute.xlu0 %538
  %540 = vrot.lane.b32.xlu0 %v231, 64
  %v541 = vpop.permute.xlu0 %540
  %542 = vrot.lane.b32.xlu0 %v232, 64
  %v543 = vpop.permute.xlu0 %542
  %544 = vrot.lane.b32.xlu0 %v233, 64
  %v545 = vpop.permute.xlu0 %544
  %v547 = vsel %vm254, %v531, 0
  %v550 = vsel %vm254, %v533, 0
  %v553 = vsel %vm254, %v535, 0
  %v556 = vsel %vm254, %v537, 0
  %v559 = vsel %vm254, %v539, 0
  %v562 = vsel %vm254, %v541, 0
  %v565 = vsel %vm254, %v543, 0
  %v568 = vsel %vm254, %v545, 0
  %570 = vmatprep.subr.bf16.mxu0 0
  %571 = vmatpush1.bf16.xpose.msra.mxu0 0
  %572 = vmatprep.subr.bf16.mxu0 0
  %573 = vmatpush1.bf16.xpose.msra.mxu0 0
  %574 = vmatprep.subr.bf16.mxu0 0
  %575 = vmatpush1.bf16.xpose.msra.mxu0 0
  %576 = vmatprep.subr.bf16.mxu0 0
  %577 = vmatpush1.bf16.xpose.msra.mxu0 0
  %578 = vmatprep.subr.bf16.mxu0 0
  %579 = vmatpush1.bf16.xpose.msra.mxu0 %v568
  %580 = vmatprep.subr.bf16.mxu0 0
  %581 = vmatpush1.bf16.xpose.msra.mxu0 %v565
  %582 = vmatprep.subr.bf16.mxu0 0
  %583 = vmatpush1.bf16.xpose.msra.mxu0 %v562
  %584 = vmatprep.subr.bf16.mxu0 0
  %585 = vmatpush1.bf16.xpose.msra.mxu0 %v559
  %586 = vmatprep.subr.bf16.mxu0 0
  %587 = vmatpush2.bf16.xpose.msra.mxu0 0
  %588 = vmatprep.subr.bf16.mxu0 0
  %589 = vmatpush2.bf16.xpose.msra.mxu0 0
  %590 = vmatprep.subr.bf16.mxu0 0
  %591 = vmatpush2.bf16.xpose.msra.mxu0 0
  %592 = vmatprep.subr.bf16.mxu0 0
  %593 = vmatpush2.bf16.xpose.msra.mxu0 0
  %594 = vmatprep.subr.bf16.mxu0 0
  %595 = vmatpush2.bf16.xpose.msra.mxu0 0
  %596 = vmatprep.subr.bf16.mxu0 0
  %597 = vmatpush2.bf16.xpose.msra.mxu0 0
  %598 = vmatprep.subr.bf16.mxu0 0
  %599 = vmatpush2.bf16.xpose.msra.mxu0 0
  %600 = vmatprep.subr.bf16.mxu0 0
  %601 = vmatpush2.bf16.xpose.msra.mxu0 0
  %602 = vmatprep.mubr.bf16.mxu0 0
  %603 = vmatmul.mubr.bf16.gmra.mxu0 %v547
  %v604 = vpop.f32.mrf.mxu0
  %v605 = vadd.f32 0.0, %v604
  %v606 = vpop.f32.mrf.mxu0
  %v607 = vpop.f32.mrf.mxu0
  %v608 = vadd.f32 0.0, %v607
  %v609 = vpop.f32.mrf.mxu0
  %610 = vmatprep.mubr.bf16.mxu0 0
  %611 = vmatmul.mubr.bf16.gmra.mxu0 %v550
  %v612 = vpop.f32.mrf.mxu0
  %v613 = vadd.f32 0.0, %v612
  %v614 = vpop.f32.mrf.mxu0
  %v615 = vpop.f32.mrf.mxu0
  %v616 = vadd.f32 0.0, %v615
  %v617 = vpop.f32.mrf.mxu0
  %618 = vmatprep.mubr.bf16.mxu0 0
  %619 = vmatmul.mubr.bf16.gmra.mxu0 %v553
  %v620 = vpop.f32.mrf.mxu0
  %v621 = vadd.f32 0.0, %v620
  %v622 = vpop.f32.mrf.mxu0
  %v623 = vpop.f32.mrf.mxu0
  %v624 = vadd.f32 0.0, %v623
  %v625 = vpop.f32.mrf.mxu0
  %626 = vmatprep.mubr.bf16.mxu0 0
  %627 = vmatmul.mubr.bf16.gmra.mxu0 %v556
  %v628 = vpop.f32.mrf.mxu0
  %v629 = vadd.f32 0.0, %v628
  %v630 = vpop.f32.mrf.mxu0
  %v631 = vpop.f32.mrf.mxu0
  %v632 = vadd.f32 0.0, %v631
  %v633 = vpop.f32.mrf.mxu0
  %634 = vdwg.mxu0
  %v635 = vsel %vm344, %v605, -inf
  %636 = vmax.xlane.f32.xlu0 %v635
  %v637 = vpop.xlane.xlu0 %636
  %v638 = vsel %vm344, %v608, -inf
  %639 = vmax.xlane.f32.xlu0 %v638
  %v640 = vpop.xlane.xlu0 %639
  %v641 = vsel %vm344, %v613, -inf
  %642 = vmax.xlane.f32.xlu0 %v641
  %v643 = vpop.xlane.xlu0 %642
  %v644 = vsel %vm344, %v616, -inf
  %645 = vmax.xlane.f32.xlu0 %v644
  %v646 = vpop.xlane.xlu0 %645
  %v647 = vsel %vm344, %v621, -inf
  %648 = vmax.xlane.f32.xlu0 %v647
  %v649 = vpop.xlane.xlu0 %648
  %v650 = vsel %vm344, %v624, -inf
  %651 = vmax.xlane.f32.xlu0 %v650
  %v652 = vpop.xlane.xlu0 %651
  %v653 = vsel %vm344, %v629, -inf
  %654 = vmax.xlane.f32.xlu0 %v653
  %v655 = vpop.xlane.xlu0 %654
  %v656 = vsel %vm344, %v632, -inf
  %657 = vmax.xlane.f32.xlu0 %v656
  %v658 = vpop.xlane.xlu0 %657
  %v659 = vsub.f32 %v605, %v637
  %v660 = vsub.f32 %v608, %v640
  %v661 = vsub.f32 %v613, %v643
  %v662 = vsub.f32 %v616, %v646
  %v663 = vsub.f32 %v621, %v649
  %v664 = vsub.f32 %v624, %v652
  %v665 = vsub.f32 %v629, %v655
  %v666 = vsub.f32 %v632, %v658
  %v667 = vmul.f32 %v659, 1.442695
  %v668 = vpow.pop %v667
  %v669 = vmul.f32 %v660, 1.442695
  %v670 = vpow.pop %v669
  %v671 = vmul.f32 %v661, 1.442695
  %v672 = vpow.pop %v671
  %v673 = vmul.f32 %v662, 1.442695
  %v674 = vpow.pop %v673
  %v675 = vmul.f32 %v663, 1.442695
  %v676 = vpow.pop %v675
  %v677 = vmul.f32 %v664, 1.442695
  %v678 = vpow.pop %v677
  %v679 = vmul.f32 %v665, 1.442695
  %v680 = vpow.pop %v679
  %v681 = vmul.f32 %v666, 1.442695
  %v682 = vpow.pop %v681
  %v683 = vsel %vm344, %v668, 0.0
  %684 = vadd.xlane.f32.xlu0 %v683
  %v685 = vpop.xlane.xlu0 %684
  %v686 = vsel %vm344, %v670, 0.0
  %687 = vadd.xlane.f32.xlu0 %v686
  %v688 = vpop.xlane.xlu0 %687
  %v689 = vsel %vm344, %v672, 0.0
  %690 = vadd.xlane.f32.xlu0 %v689
  %v691 = vpop.xlane.xlu0 %690
  %v692 = vsel %vm344, %v674, 0.0
  %693 = vadd.xlane.f32.xlu0 %v692
  %v694 = vpop.xlane.xlu0 %693
  %v695 = vsel %vm344, %v676, 0.0
  %696 = vadd.xlane.f32.xlu0 %v695
  %v697 = vpop.xlane.xlu0 %696
  %v698 = vsel %vm344, %v678, 0.0
  %699 = vadd.xlane.f32.xlu0 %v698
  %v700 = vpop.xlane.xlu0 %699
  %v701 = vsel %vm344, %v680, 0.0
  %702 = vadd.xlane.f32.xlu0 %v701
  %v703 = vpop.xlane.xlu0 %702
  %v704 = vsel %vm344, %v682, 0.0
  %705 = vadd.xlane.f32.xlu0 %v704
  %v706 = vpop.xlane.xlu0 %705
  %v707 = vrcp.pop %v685
  %v708 = vrcp.pop %v688
  %v709 = vrcp.pop %v691
  %v710 = vrcp.pop %v694
  %v711 = vrcp.pop %v697
  %v712 = vrcp.pop %v700
  %v713 = vrcp.pop %v703
  %v714 = vrcp.pop %v706
  %v715 = vmul.f32 %v668, %v707
  %v716 = vmul.f32 %v670, %v708
  %v717 = vmul.f32 %v672, %v709
  %v718 = vmul.f32 %v674, %v710
  %v719 = vmul.f32 %v676, %v711
  %v720 = vmul.f32 %v678, %v712
  %v721 = vmul.f32 %v680, %v713
  %v722 = vmul.f32 %v682, %v714
  %v723 = vpack.c.bf16 %v716, %v715
  %v724 = vpack.c.bf16 %v718, %v717
  %v725 = vpack.c.bf16 %v720, %v719
  %v726 = vpack.c.bf16 %v722, %v721
  %727 = vrot.lane.b32.xlu0 %v230, 32
  %v728 = vpop.permute.xlu0 %727
  %729 = vrot.lane.b32.xlu0 %v231, 32
  %v730 = vpop.permute.xlu0 %729
  %731 = vrot.lane.b32.xlu0 %v232, 32
  %v732 = vpop.permute.xlu0 %731
  %733 = vrot.lane.b32.xlu0 %v233, 32
  %v734 = vpop.permute.xlu0 %733
  %v740 = vsel %vm344, %v723, 0
  %v743 = vsel %vm344, %v724, 0
  %v746 = vsel %vm344, %v725, 0
  %v749 = vsel %vm344, %v726, 0
  %751 = vmatprep.subr.bf16.mxu0 0
  %752 = vmatpush1.bf16.msra.mxu0 0
  %753 = vmatprep.subr.bf16.mxu0 0
  %754 = vmatpush1.bf16.msra.mxu0 0
  %755 = vmatprep.subr.bf16.mxu0 0
  %756 = vmatpush1.bf16.msra.mxu0 0
  %757 = vmatprep.subr.bf16.mxu0 0
  %758 = vmatpush1.bf16.msra.mxu0 0
  %759 = vmatprep.subr.bf16.mxu0 0
  %760 = vmatpush1.bf16.msra.mxu0 %v734
  %761 = vmatprep.subr.bf16.mxu0 0
  %762 = vmatpush1.bf16.msra.mxu0 %v732
  %763 = vmatprep.subr.bf16.mxu0 0
  %764 = vmatpush1.bf16.msra.mxu0 %v730
  %765 = vmatprep.subr.bf16.mxu0 0
  %766 = vmatpush1.bf16.msra.mxu0 %v728
  %767 = vmatprep.subr.bf16.mxu0 0
  %768 = vmatpush2.bf16.msra.mxu0 0
  %769 = vmatprep.subr.bf16.mxu0 0
  %770 = vmatpush2.bf16.msra.mxu0 0
  %771 = vmatprep.subr.bf16.mxu0 0
  %772 = vmatpush2.bf16.msra.mxu0 0
  %773 = vmatprep.subr.bf16.mxu0 0
  %774 = vmatpush2.bf16.msra.mxu0 0
  %775 = vmatprep.subr.bf16.mxu0 0
  %776 = vmatpush2.bf16.msra.mxu0 0
  %777 = vmatprep.subr.bf16.mxu0 0
  %778 = vmatpush2.bf16.msra.mxu0 0
  %779 = vmatprep.subr.bf16.mxu0 0
  %780 = vmatpush2.bf16.msra.mxu0 0
  %781 = vmatprep.subr.bf16.mxu0 0
  %782 = vmatpush2.bf16.msra.mxu0 0
  %783 = vmatprep.mubr.bf16.mxu0 0
  %784 = vmatmul.mubr.bf16.gmra.mxu0 %v740
  %v785 = vpop.f32.mrf.mxu0
  %v786 = vadd.f32 0.0, %v785
  %v787 = vpop.f32.mrf.mxu0
  %v788 = vpop.f32.mrf.mxu0
  %v789 = vadd.f32 0.0, %v788
  %v790 = vpop.f32.mrf.mxu0
  %791 = vmatprep.mubr.bf16.mxu0 0
  %792 = vmatmul.mubr.bf16.gmra.mxu0 %v743
  %v793 = vpop.f32.mrf.mxu0
  %v794 = vadd.f32 0.0, %v793
  %v795 = vpop.f32.mrf.mxu0
  %v796 = vpop.f32.mrf.mxu0
  %v797 = vadd.f32 0.0, %v796
  %v798 = vpop.f32.mrf.mxu0
  %799 = vmatprep.mubr.bf16.mxu0 0
  %800 = vmatmul.mubr.bf16.gmra.mxu0 %v746
  %v801 = vpop.f32.mrf.mxu0
  %v802 = vadd.f32 0.0, %v801
  %v803 = vpop.f32.mrf.mxu0
  %v804 = vpop.f32.mrf.mxu0
  %v805 = vadd.f32 0.0, %v804
  %v806 = vpop.f32.mrf.mxu0
  %807 = vmatprep.mubr.bf16.mxu0 0
  %808 = vmatmul.mubr.bf16.gmra.mxu0 %v749
  %v809 = vpop.f32.mrf.mxu0
  %v810 = vadd.f32 0.0, %v809
  %v811 = vpop.f32.mrf.mxu0
  %v812 = vpop.f32.mrf.mxu0
  %v813 = vadd.f32 0.0, %v812
  %v814 = vpop.f32.mrf.mxu0
  %815 = vdwg.mxu0
  %v816 = vpack.c.bf16 %v499, %v496
  %v817 = vpack.c.bf16 %v507, %v504
  %v818 = vpack.c.bf16 %v515, %v512
  %v819 = vpack.c.bf16 %v523, %v520
  %v820 = vpack.c.bf16 %v789, %v786
  %v821 = vpack.c.bf16 %v797, %v794
  %v822 = vpack.c.bf16 %v805, %v802
  %v823 = vpack.c.bf16 %v813, %v810
  %v824 = vld [vmem:[%s4] sm:$0xf]
  %v825 = vld [vmem:[%s4 + $0xc] sm:$0xf]
  %v826 = vld [vmem:[%s4 + $0x18] sm:$0xf]
  %v827 = vld [vmem:[%s4 + $0x24] sm:$0xf]
  %v832 = vunpack.c.l.b16 %v824
  %v833 = vunpack.c.l.b16 %v825
  %v834 = vunpack.c.l.b16 %v826
  %v835 = vunpack.c.l.b16 %v827
  %v836 = vpack.c.b16 %v833, %v832
  %v837 = vpack.c.b16 %v835, %v834
  %v841 = vsel %vm254, %v816, 0
  %v844 = vsel %vm254, %v817, 0
  %v847 = vsel %vm254, %v818, 0
  %v850 = vsel %vm254, %v819, 0
  %v853 = vsel %vm254, %v820, 0
  %v856 = vsel %vm254, %v821, 0
  %v859 = vsel %vm254, %v822, 0
  %v862 = vsel %vm254, %v823, 0
  %864 = vmatprep.subr.bf16.mxu0 0
  %865 = vmatpush1.bf16.msra.mxu0 0
  %866 = vmatprep.subr.bf16.mxu0 0
  %867 = vmatpush1.bf16.msra.mxu0 0
  %868 = vmatprep.subr.bf16.mxu0 0
  %869 = vmatpush1.bf16.msra.mxu0 0
  %870 = vmatprep.subr.bf16.mxu0 0
  %871 = vmatpush1.bf16.msra.mxu0 0
  %872 = vmatprep.subr.bf16.mxu0 0
  %873 = vmatpush1.bf16.msra.mxu0 0
  %874 = vmatprep.subr.bf16.mxu0 0
  %875 = vmatpush1.bf16.msra.mxu0 0
  %876 = vmatprep.subr.bf16.mxu0 0
  %877 = vmatpush1.bf16.msra.mxu0 %v837
  %878 = vmatprep.subr.bf16.mxu0 0
  %879 = vmatpush1.bf16.msra.mxu0 %v836
  %880 = vmatprep.subr.bf16.mxu0 0
  %881 = vmatpush2.bf16.msra.mxu0 0
  %882 = vmatprep.subr.bf16.mxu0 0
  %883 = vmatpush2.bf16.msra.mxu0 0
  %884 = vmatprep.subr.bf16.mxu0 0
  %885 = vmatpush2.bf16.msra.mxu0 0
  %886 = vmatprep.subr.bf16.mxu0 0
  %887 = vmatpush2.bf16.msra.mxu0 0
  %888 = vmatprep.subr.bf16.mxu0 0
  %889 = vmatpush2.bf16.msra.mxu0 0
  %890 = vmatprep.subr.bf16.mxu0 0
  %891 = vmatpush2.bf16.msra.mxu0 0
  %892 = vmatprep.subr.bf16.mxu0 0
  %893 = vmatpush2.bf16.msra.mxu0 0
  %894 = vmatprep.subr.bf16.mxu0 0
  %895 = vmatpush2.bf16.msra.mxu0 0
  %896 = vmatprep.mubr.bf16.mxu0 0
  %897 = vmatmul.mubr.bf16.gmra.mxu0 %v841
  %v898 = vpop.f32.mrf.mxu0
  %v899 = vadd.f32 0.0, %v898
  %v900 = vpop.f32.mrf.mxu0
  %v901 = vpop.f32.mrf.mxu0
  %v902 = vadd.f32 0.0, %v901
  %v903 = vpop.f32.mrf.mxu0
  %904 = vmatprep.mubr.bf16.mxu0 0
  %905 = vmatmul.mubr.bf16.gmra.mxu0 %v844
  %v906 = vpop.f32.mrf.mxu0
  %v907 = vadd.f32 0.0, %v906
  %v908 = vpop.f32.mrf.mxu0
  %v909 = vpop.f32.mrf.mxu0
  %v910 = vadd.f32 0.0, %v909
  %v911 = vpop.f32.mrf.mxu0
  %912 = vmatprep.mubr.bf16.mxu0 0
  %913 = vmatmul.mubr.bf16.gmra.mxu0 %v847
  %v914 = vpop.f32.mrf.mxu0
  %v915 = vadd.f32 0.0, %v914
  %v916 = vpop.f32.mrf.mxu0
  %v917 = vpop.f32.mrf.mxu0
  %v918 = vadd.f32 0.0, %v917
  %v919 = vpop.f32.mrf.mxu0
  %920 = vmatprep.mubr.bf16.mxu0 0
  %921 = vmatmul.mubr.bf16.gmra.mxu0 %v850
  %v922 = vpop.f32.mrf.mxu0
  %v923 = vadd.f32 0.0, %v922
  %v924 = vpop.f32.mrf.mxu0
  %v925 = vpop.f32.mrf.mxu0
  %v926 = vadd.f32 0.0, %v925
  %v927 = vpop.f32.mrf.mxu0
  %928 = vmatprep.mubr.bf16.mxu0 0
  %929 = vmatmul.mubr.bf16.gmra.mxu0 %v853
  %v930 = vpop.f32.mrf.mxu0
  %v931 = vadd.f32 0.0, %v930
  %v932 = vpop.f32.mrf.mxu0
  %v933 = vpop.f32.mrf.mxu0
  %v934 = vadd.f32 0.0, %v933
  %v935 = vpop.f32.mrf.mxu0
  %936 = vmatprep.mubr.bf16.mxu0 0
  %937 = vmatmul.mubr.bf16.gmra.mxu0 %v856
  %v938 = vpop.f32.mrf.mxu0
  %v939 = vadd.f32 0.0, %v938
  %v940 = vpop.f32.mrf.mxu0
  %v941 = vpop.f32.mrf.mxu0
  %v942 = vadd.f32 0.0, %v941
  %v943 = vpop.f32.mrf.mxu0
  %944 = vmatprep.mubr.bf16.mxu0 0
  %945 = vmatmul.mubr.bf16.gmra.mxu0 %v859
  %v946 = vpop.f32.mrf.mxu0
  %v947 = vadd.f32 0.0, %v946
  %v948 = vpop.f32.mrf.mxu0
  %v949 = vpop.f32.mrf.mxu0
  %v950 = vadd.f32 0.0, %v949
  %v951 = vpop.f32.mrf.mxu0
  %952 = vmatprep.mubr.bf16.mxu0 0
  %953 = vmatmul.mubr.bf16.gmra.mxu0 %v862
  %v954 = vpop.f32.mrf.mxu0
  %v955 = vadd.f32 0.0, %v954
  %v956 = vpop.f32.mrf.mxu0
  %v957 = vpop.f32.mrf.mxu0
  %v958 = vadd.f32 0.0, %v957
  %v959 = vpop.f32.mrf.mxu0
  %960 = vdwg.mxu0
  %v961 = vadd.f32 %v164, %v899
  %v962 = vadd.f32 %v167, %v902
  %v963 = vadd.f32 %v172, %v907
  %v964 = vadd.f32 %v175, %v910
  %v965 = vadd.f32 %v180, %v915
  %v966 = vadd.f32 %v183, %v918
  %v967 = vadd.f32 %v188, %v923
  %v968 = vadd.f32 %v191, %v926
  %v969 = vadd.f32 %v196, %v931
  %v970 = vadd.f32 %v199, %v934
  %v971 = vadd.f32 %v204, %v939
  %v972 = vadd.f32 %v207, %v942
  %v973 = vadd.f32 %v212, %v947
  %v974 = vadd.f32 %v215, %v950
  %v975 = vadd.f32 %v220, %v955
  %v976 = vadd.f32 %v223, %v958
  %v977 = vpack.c.bf16 %v962, %v961
  %v978 = vpack.c.bf16 %v964, %v963
  %v979 = vpack.c.bf16 %v966, %v965
  %v980 = vpack.c.bf16 %v968, %v967
  %v981 = vpack.c.bf16 %v970, %v969
  %v982 = vpack.c.bf16 %v972, %v971
  %v983 = vpack.c.bf16 %v974, %v973
  %v984 = vpack.c.bf16 %v976, %v975
  %985 = vrot.lane.b32.xlu0 %v836, 96
  %v986 = vpop.permute.xlu0 %985
  %987 = vrot.lane.b32.xlu0 %v837, 96
  %v988 = vpop.permute.xlu0 %987
  %v992 = vsel %vm254, %v977, 0
  %v995 = vsel %vm254, %v978, 0
  %v998 = vsel %vm254, %v979, 0
  %v1001 = vsel %vm254, %v980, 0
  %v1004 = vsel %vm254, %v981, 0
  %v1007 = vsel %vm254, %v982, 0
  %v1010 = vsel %vm254, %v983, 0
  %v1013 = vsel %vm254, %v984, 0
  %1015 = vmatprep.subr.bf16.mxu0 0
  %1016 = vmatpush1.bf16.msra.mxu0 0
  %1017 = vmatprep.subr.bf16.mxu0 0
  %1018 = vmatpush1.bf16.msra.mxu0 0
  %1019 = vmatprep.subr.bf16.mxu0 0
  %1020 = vmatpush1.bf16.msra.mxu0 0
  %1021 = vmatprep.subr.bf16.mxu0 0
  %1022 = vmatpush1.bf16.msra.mxu0 0
  %1023 = vmatprep.subr.bf16.mxu0 0
  %1024 = vmatpush1.bf16.msra.mxu0 0
  %1025 = vmatprep.subr.bf16.mxu0 0
  %1026 = vmatpush1.bf16.msra.mxu0 0
  %1027 = vmatprep.subr.bf16.mxu0 0
  %1028 = vmatpush1.bf16.msra.mxu0 %v988
  %1029 = vmatprep.subr.bf16.mxu0 0
  %1030 = vmatpush1.bf16.msra.mxu0 %v986
  %1031 = vmatprep.subr.bf16.mxu0 0
  %1032 = vmatpush2.bf16.msra.mxu0 0
  %1033 = vmatprep.subr.bf16.mxu0 0
  %1034 = vmatpush2.bf16.msra.mxu0 0
  %1035 = vmatprep.subr.bf16.mxu0 0
  %1036 = vmatpush2.bf16.msra.mxu0 0
  %1037 = vmatprep.subr.bf16.mxu0 0
  %1038 = vmatpush2.bf16.msra.mxu0 0
  %1039 = vmatprep.subr.bf16.mxu0 0
  %1040 = vmatpush2.bf16.msra.mxu0 0
  %1041 = vmatprep.subr.bf16.mxu0 0
  %1042 = vmatpush2.bf16.msra.mxu0 0
  %1043 = vmatprep.subr.bf16.mxu0 0
  %1044 = vmatpush2.bf16.msra.mxu0 0
  %1045 = vmatprep.subr.bf16.mxu0 0
  %1046 = vmatpush2.bf16.msra.mxu0 0
  %1047 = vmatprep.mubr.bf16.mxu0 0
  %1048 = vmatmul.mubr.bf16.gmra.mxu0 %v992
  %v1049 = vpop.f32.mrf.mxu0
  %v1050 = vadd.f32 0.0, %v1049
  %v1051 = vpop.f32.mrf.mxu0
  %v1052 = vpop.f32.mrf.mxu0
  %v1053 = vadd.f32 0.0, %v1052
  %v1054 = vpop.f32.mrf.mxu0
  %1055 = vmatprep.mubr.bf16.mxu0 0
  %1056 = vmatmul.mubr.bf16.gmra.mxu0 %v995
  %v1057 = vpop.f32.mrf.mxu0
  %v1058 = vadd.f32 0.0, %v1057
  %v1059 = vpop.f32.mrf.mxu0
  %v1060 = vpop.f32.mrf.mxu0
  %v1061 = vadd.f32 0.0, %v1060
  %v1062 = vpop.f32.mrf.mxu0
  %1063 = vmatprep.mubr.bf16.mxu0 0
  %1064 = vmatmul.mubr.bf16.gmra.mxu0 %v998
  %v1065 = vpop.f32.mrf.mxu0
  %v1066 = vadd.f32 0.0, %v1065
  %v1067 = vpop.f32.mrf.mxu0
  %v1068 = vpop.f32.mrf.mxu0
  %v1069 = vadd.f32 0.0, %v1068
  %v1070 = vpop.f32.mrf.mxu0
  %1071 = vmatprep.mubr.bf16.mxu0 0
  %1072 = vmatmul.mubr.bf16.gmra.mxu0 %v1001
  %v1073 = vpop.f32.mrf.mxu0
  %v1074 = vadd.f32 0.0, %v1073
  %v1075 = vpop.f32.mrf.mxu0
  %v1076 = vpop.f32.mrf.mxu0
  %v1077 = vadd.f32 0.0, %v1076
  %v1078 = vpop.f32.mrf.mxu0
  %1079 = vmatprep.mubr.bf16.mxu0 0
  %1080 = vmatmul.mubr.bf16.gmra.mxu0 %v1004
  %v1081 = vpop.f32.mrf.mxu0
  %v1082 = vadd.f32 0.0, %v1081
  %v1083 = vpop.f32.mrf.mxu0
  %v1084 = vpop.f32.mrf.mxu0
  %v1085 = vadd.f32 0.0, %v1084
  %v1086 = vpop.f32.mrf.mxu0
  %1087 = vmatprep.mubr.bf16.mxu0 0
  %1088 = vmatmul.mubr.bf16.gmra.mxu0 %v1007
  %v1089 = vpop.f32.mrf.mxu0
  %v1090 = vadd.f32 0.0, %v1089
  %v1091 = vpop.f32.mrf.mxu0
  %v1092 = vpop.f32.mrf.mxu0
  %v1093 = vadd.f32 0.0, %v1092
  %v1094 = vpop.f32.mrf.mxu0
  %1095 = vmatprep.mubr.bf16.mxu0 0
  %1096 = vmatmul.mubr.bf16.gmra.mxu0 %v1010
  %v1097 = vpop.f32.mrf.mxu0
  %v1098 = vadd.f32 0.0, %v1097
  %v1099 = vpop.f32.mrf.mxu0
  %v1100 = vpop.f32.mrf.mxu0
  %v1101 = vadd.f32 0.0, %v1100
  %v1102 = vpop.f32.mrf.mxu0
  %1103 = vmatprep.mubr.bf16.mxu0 0
  %1104 = vmatmul.mubr.bf16.gmra.mxu0 %v1013
  %v1105 = vpop.f32.mrf.mxu0
  %v1106 = vadd.f32 0.0, %v1105
  %v1107 = vpop.f32.mrf.mxu0
  %v1108 = vpop.f32.mrf.mxu0
  %v1109 = vadd.f32 0.0, %v1108
  %v1110 = vpop.f32.mrf.mxu0
  %1111 = vdwg.mxu0
  %v1112 = vmax.f32 %v1050, 0.0
  %v1113 = vmax.f32 %v1053, 0.0
  %v1114 = vmax.f32 %v1058, 0.0
  %v1115 = vmax.f32 %v1061, 0.0
  %v1116 = vmax.f32 %v1066, 0.0
  %v1117 = vmax.f32 %v1069, 0.0
  %v1118 = vmax.f32 %v1074, 0.0
  %v1119 = vmax.f32 %v1077, 0.0
  %v1120 = vmax.f32 %v1082, 0.0
  %v1121 = vmax.f32 %v1085, 0.0
  %v1122 = vmax.f32 %v1090, 0.0
  %v1123 = vmax.f32 %v1093, 0.0
  %v1124 = vmax.f32 %v1098, 0.0
  %v1125 = vmax.f32 %v1101, 0.0
  %v1126 = vmax.f32 %v1106, 0.0
  %v1127 = vmax.f32 %v1109, 0.0
  %v1128 = vpack.c.bf16 %v1113, %v1112
  %v1129 = vpack.c.bf16 %v1115, %v1114
  %v1130 = vpack.c.bf16 %v1117, %v1116
  %v1131 = vpack.c.bf16 %v1119, %v1118
  %v1132 = vpack.c.bf16 %v1121, %v1120
  %v1133 = vpack.c.bf16 %v1123, %v1122
  %v1134 = vpack.c.bf16 %v1125, %v1124
  %v1135 = vpack.c.bf16 %v1127, %v1126
  %v1136 = vld [vmem:[%s5] sm:$0xf]
  %v1137 = vld [vmem:[%s5 + $0x4] sm:$0xf]
  %v1138 = vld [vmem:[%s5 + $0x8] sm:$0xf]
  %v1139 = vld [vmem:[%s5 + $0xc] sm:$0xf]
  %v1140 = vld [vmem:[%s5 + $0x10] sm:$0xf]
  %v1141 = vld [vmem:[%s5 + $0x14] sm:$0xf]
  %v1142 = vld [vmem:[%s5 + $0x18] sm:$0xf]
  %v1143 = vld [vmem:[%s5 + $0x1c] sm:$0xf]
  %v1152 = vunpack.c.l.b16 %v1136
  %v1153 = vunpack.c.l.b16 %v1137
  %v1154 = vunpack.c.l.b16 %v1138
  %v1155 = vunpack.c.l.b16 %v1139
  %v1156 = vunpack.c.l.b16 %v1140
  %v1157 = vunpack.c.l.b16 %v1141
  %v1158 = vunpack.c.l.b16 %v1142
  %v1159 = vunpack.c.l.b16 %v1143
  %v1160 = vpack.c.b16 %v1153, %v1152
  %v1161 = vpack.c.b16 %v1155, %v1154
  %v1162 = vpack.c.b16 %v1157, %v1156
  %v1163 = vpack.c.b16 %v1159, %v1158
  %v1169 = vsel %vm344, %v1128, 0
  %v1172 = vsel %vm344, %v1129, 0
  %v1175 = vsel %vm344, %v1130, 0
  %v1178 = vsel %vm344, %v1131, 0
  %v1181 = vsel %vm344, %v1132, 0
  %v1184 = vsel %vm344, %v1133, 0
  %v1187 = vsel %vm344, %v1134, 0
  %v1190 = vsel %vm344, %v1135, 0
  %1192 = vmatprep.subr.bf16.mxu0 0
  %1193 = vmatpush1.bf16.msra.mxu0 0
  %1194 = vmatprep.subr.bf16.mxu0 0
  %1195 = vmatpush1.bf16.msra.mxu0 0
  %1196 = vmatprep.subr.bf16.mxu0 0
  %1197 = vmatpush1.bf16.msra.mxu0 0
  %1198 = vmatprep.subr.bf16.mxu0 0
  %1199 = vmatpush1.bf16.msra.mxu0 0
  %1200 = vmatprep.subr.bf16.mxu0 0
  %1201 = vmatpush1.bf16.msra.mxu0 %v1163
  %1202 = vmatprep.subr.bf16.mxu0 0
  %1203 = vmatpush1.bf16.msra.mxu0 %v1162
  %1204 = vmatprep.subr.bf16.mxu0 0
  %1205 = vmatpush1.bf16.msra.mxu0 %v1161
  %1206 = vmatprep.subr.bf16.mxu0 0
  %1207 = vmatpush1.bf16.msra.mxu0 %v1160
  %1208 = vmatprep.subr.bf16.mxu0 0
  %1209 = vmatpush2.bf16.msra.mxu0 0
  %1210 = vmatprep.subr.bf16.mxu0 0
  %1211 = vmatpush2.bf16.msra.mxu0 0
  %1212 = vmatprep.subr.bf16.mxu0 0
  %1213 = vmatpush2.bf16.msra.mxu0 0
  %1214 = vmatprep.subr.bf16.mxu0 0
  %1215 = vmatpush2.bf16.msra.mxu0 0
  %1216 = vmatprep.subr.bf16.mxu0 0
  %1217 = vmatpush2.bf16.msra.mxu0 0
  %1218 = vmatprep.subr.bf16.mxu0 0
  %1219 = vmatpush2.bf16.msra.mxu0 0
  %1220 = vmatprep.subr.bf16.mxu0 0
  %1221 = vmatpush2.bf16.msra.mxu0 0
  %1222 = vmatprep.subr.bf16.mxu0 0
  %1223 = vmatpush2.bf16.msra.mxu0 0
  %1224 = vmatprep.mubr.bf16.mxu0 0
  %1225 = vmatmul.mubr.bf16.gmra.mxu0 %v1169
  %v1226 = vpop.f32.mrf.mxu0
  %v1227 = vadd.f32 0.0, %v1226
  %v1228 = vpop.f32.mrf.mxu0
  %v1229 = vpop.f32.mrf.mxu0
  %v1230 = vadd.f32 0.0, %v1229
  %v1231 = vpop.f32.mrf.mxu0
  %1232 = vmatprep.mubr.bf16.mxu0 0
  %1233 = vmatmul.mubr.bf16.gmra.mxu0 %v1172
  %v1234 = vpop.f32.mrf.mxu0
  %v1235 = vadd.f32 0.0, %v1234
  %v1236 = vpop.f32.mrf.mxu0
  %v1237 = vpop.f32.mrf.mxu0
  %v1238 = vadd.f32 0.0, %v1237
  %v1239 = vpop.f32.mrf.mxu0
  %1240 = vmatprep.mubr.bf16.mxu0 0
  %1241 = vmatmul.mubr.bf16.gmra.mxu0 %v1175
  %v1242 = vpop.f32.mrf.mxu0
  %v1243 = vadd.f32 0.0, %v1242
  %v1244 = vpop.f32.mrf.mxu0
  %v1245 = vpop.f32.mrf.mxu0
  %v1246 = vadd.f32 0.0, %v1245
  %v1247 = vpop.f32.mrf.mxu0
  %1248 = vmatprep.mubr.bf16.mxu0 0
  %1249 = vmatmul.mubr.bf16.gmra.mxu0 %v1178
  %v1250 = vpop.f32.mrf.mxu0
  %v1251 = vadd.f32 0.0, %v1250
  %v1252 = vpop.f32.mrf.mxu0
  %v1253 = vpop.f32.mrf.mxu0
  %v1254 = vadd.f32 0.0, %v1253
  %v1255 = vpop.f32.mrf.mxu0
  %1256 = vmatprep.mubr.bf16.mxu0 0
  %1257 = vmatmul.mubr.bf16.gmra.mxu0 %v1181
  %v1258 = vpop.f32.mrf.mxu0
  %v1259 = vadd.f32 0.0, %v1258
  %v1260 = vpop.f32.mrf.mxu0
  %v1261 = vpop.f32.mrf.mxu0
  %v1262 = vadd.f32 0.0, %v1261
  %v1263 = vpop.f32.mrf.mxu0
  %1264 = vmatprep.mubr.bf16.mxu0 0
  %1265 = vmatmul.mubr.bf16.gmra.mxu0 %v1184
  %v1266 = vpop.f32.mrf.mxu0
  %v1267 = vadd.f32 0.0, %v1266
  %v1268 = vpop.f32.mrf.mxu0
  %v1269 = vpop.f32.mrf.mxu0
  %v1270 = vadd.f32 0.0, %v1269
  %v1271 = vpop.f32.mrf.mxu0
  %1272 = vmatprep.mubr.bf16.mxu0 0
  %1273 = vmatmul.mubr.bf16.gmra.mxu0 %v1187
  %v1274 = vpop.f32.mrf.mxu0
  %v1275 = vadd.f32 0.0, %v1274
  %v1276 = vpop.f32.mrf.mxu0
  %v1277 = vpop.f32.mrf.mxu0
  %v1278 = vadd.f32 0.0, %v1277
  %v1279 = vpop.f32.mrf.mxu0
  %1280 = vmatprep.mubr.bf16.mxu0 0
  %1281 = vmatmul.mubr.bf16.gmra.mxu0 %v1190
  %v1282 = vpop.f32.mrf.mxu0
  %v1283 = vadd.f32 0.0, %v1282
  %v1284 = vpop.f32.mrf.mxu0
  %v1285 = vpop.f32.mrf.mxu0
  %v1286 = vadd.f32 0.0, %v1285
  %v1287 = vpop.f32.mrf.mxu0
  %1288 = vdwg.mxu0
  %v1289 = vadd.f32 %v961, %v1227
  %v1290 = vadd.f32 %v962, %v1230
  %v1291 = vadd.f32 %v963, %v1235
  %v1292 = vadd.f32 %v964, %v1238
  %v1293 = vadd.f32 %v965, %v1243
  %v1294 = vadd.f32 %v966, %v1246
  %v1295 = vadd.f32 %v967, %v1251
  %v1296 = vadd.f32 %v968, %v1254
  %v1297 = vadd.f32 %v969, %v1259
  %v1298 = vadd.f32 %v970, %v1262
  %v1299 = vadd.f32 %v971, %v1267
  %v1300 = vadd.f32 %v972, %v1270
  %v1301 = vadd.f32 %v973, %v1275
  %v1302 = vadd.f32 %v974, %v1278
  %v1303 = vadd.f32 %v975, %v1283
  %v1304 = vadd.f32 %v976, %v1286
  %v1305 = vld [vmem:[%s6] sm:$0x1]
  %v1306 = vld [vmem:[%s6 + $0x1] sm:$0x1]
  %v1307 = vld [vmem:[%s6 + $0x2] sm:$0x1]
  %v1308 = vld [vmem:[%s6 + $0x3] sm:$0x1]
  %v1309 = vld [vmem:[%s6 + $0x4] sm:$0x1]
  %v1310 = vld [vmem:[%s6 + $0x5] sm:$0x1]
  %v1311 = vld [vmem:[%s1] sm:$0x3]
  %1313 = vset.pattern.permute.xlu0 32
  %1314 = vperm.xlu0 %1313, %v1311
  %v1315 = vpop.permute.xlu0 %1314
  %v1317 = vlaneseq
  %v1318 = vshrl.u32 %v1317, 7
  %v1319 = vsub.s32 0, %v1318
  %v1320 = vrot.slane %v1305, %v1319
  %v1321 = vmul.f32 %v1315, %v1320
  %v1322 = vadd.f32 %v1311, %v1321
  %1323 = vset.pattern.permute.xlu0 33
  %1324 = vperm.xlu0 %1323, %v1311
  %v1325 = vpop.permute.xlu0 %1324
  %v1327 = vlaneseq
  %v1328 = vshrl.u32 %v1327, 7
  %v1329 = vsub.s32 0, %v1328
  %v1330 = vrot.slane %v1306, %v1329
  %v1331 = vmul.f32 %v1325, %v1330
  %v1332 = vadd.f32 %v1322, %v1331
  %v1333 = vlaneseq
  %v1334 = vshrl.u32 %v1333, 7
  %v1335 = vsub.s32 0, %v1334
  %v1336 = vrot.slane %v1307, %v1335
  %v1337 = vadd.f32 %v1332, %v1336
  %v1338 = vpack.c.bf16 %v1337, %v1337
  %1339 = vrot.lane.b32.xlu0 %v836, 32
  %v1340 = vpop.permute.xlu0 %1339
  %1341 = vrot.lane.b32.xlu0 %v837, 32
  %v1342 = vpop.permute.xlu0 %1341
  %v1346 = vsel %vm254, %v1338, 0
  %1348 = vmatprep.subr.bf16.mxu0 0
  %1349 = vmatpush1.bf16.msra.mxu0 0
  %1350 = vmatprep.subr.bf16.mxu0 0
  %1351 = vmatpush1.bf16.msra.mxu0 0
  %1352 = vmatprep.subr.bf16.mxu0 0
  %1353 = vmatpush1.bf16.msra.mxu0 0
  %1354 = vmatprep.subr.bf16.mxu0 0
  %1355 = vmatpush1.bf16.msra.mxu0 0
  %1356 = vmatprep.subr.bf16.mxu0 0
  %1357 = vmatpush1.bf16.msra.mxu0 0
  %1358 = vmatprep.subr.bf16.mxu0 0
  %1359 = vmatpush1.bf16.msra.mxu0 0
  %1360 = vmatprep.subr.bf16.mxu0 0
  %1361 = vmatpush1.bf16.msra.mxu0 %v1342
  %1362 = vmatprep.subr.bf16.mxu0 0
  %1363 = vmatpush1.bf16.msra.mxu0 %v1340
  %1364 = vmatprep.subr.bf16.mxu0 0
  %1365 = vmatpush2.bf16.msra.mxu0 0
  %1366 = vmatprep.subr.bf16.mxu0 0
  %1367 = vmatpush2.bf16.msra.mxu0 0
  %1368 = vmatprep.subr.bf16.mxu0 0
  %1369 = vmatpush2.bf16.msra.mxu0 0
  %1370 = vmatprep.subr.bf16.mxu0 0
  %1371 = vmatpush2.bf16.msra.mxu0 0
  %1372 = vmatprep.subr.bf16.mxu0 0
  %1373 = vmatpush2.bf16.msra.mxu0 0
  %1374 = vmatprep.subr.bf16.mxu0 0
  %1375 = vmatpush2.bf16.msra.mxu0 0
  %1376 = vmatprep.subr.bf16.mxu0 0
  %1377 = vmatpush2.bf16.msra.mxu0 0
  %1378 = vmatprep.subr.bf16.mxu0 0
  %1379 = vmatpush2.bf16.msra.mxu0 0
  %1380 = vmatprep.mubr.bf16.mxu0 0
  %1381 = vmatmul.mubr.bf16.gmra.mxu0 %v1346
  %v1382 = vpop.f32.mrf.mxu0
  %v1383 = vadd.f32 0.0, %v1382
  %v1384 = vpop.f32.mrf.mxu0
  %v1385 = vpop.f32.mrf.mxu0
  %v1386 = vpop.f32.mrf.mxu0
  %1387 = vdwg.mxu0
  %v1388 = vpack.c.bf16 %v1290, %v1289
  %v1389 = vpack.c.bf16 %v1292, %v1291
  %v1390 = vpack.c.bf16 %v1294, %v1293
  %v1391 = vpack.c.bf16 %v1296, %v1295
  %v1392 = vpack.c.bf16 %v1298, %v1297
  %v1393 = vpack.c.bf16 %v1300, %v1299
  %v1394 = vpack.c.bf16 %v1302, %v1301
  %v1395 = vpack.c.bf16 %v1304, %v1303
  %v1396 = vld [vmem:[%s4 + $0x4] sm:$0xf]
  %v1397 = vld [vmem:[%s4 + $0x10] sm:$0xf]
  %v1398 = vld [vmem:[%s4 + $0x1c] sm:$0xf]
  %v1399 = vld [vmem:[%s4 + $0x28] sm:$0xf]
  %v1404 = vunpack.c.l.b16 %v1396
  %v1405 = vunpack.c.l.b16 %v1397
  %v1406 = vunpack.c.l.b16 %v1398
  %v1407 = vunpack.c.l.b16 %v1399
  %v1408 = vpack.c.b16 %v1405, %v1404
  %v1409 = vpack.c.b16 %v1407, %v1406
  %v1413 = vsel %vm254, %v1388, 0
  %v1416 = vsel %vm254, %v1389, 0
  %v1419 = vsel %vm254, %v1390, 0
  %v1422 = vsel %vm254, %v1391, 0
  %v1425 = vsel %vm254, %v1392, 0
  %v1428 = vsel %vm254, %v1393, 0
  %v1431 = vsel %vm254, %v1394, 0
  %v1434 = vsel %vm254, %v1395, 0
  %1436 = vmatprep.subr.bf16.mxu0 0
  %1437 = vmatpush1.bf16.msra.mxu0 0
  %1438 = vmatprep.subr.bf16.mxu0 0
  %1439 = vmatpush1.bf16.msra.mxu0 0
  %1440 = vmatprep.subr.bf16.mxu0 0
  %1441 = vmatpush1.bf16.msra.mxu0 0
  %1442 = vmatprep.subr.bf16.mxu0 0
  %1443 = vmatpush1.bf16.msra.mxu0 0
  %1444 = vmatprep.subr.bf16.mxu0 0
  %1445 = vmatpush1.bf16.msra.mxu0 0
  %1446 = vmatprep.subr.bf16.mxu0 0
  %1447 = vmatpush1.bf16.msra.mxu0 0
  %1448 = vmatprep.subr.bf16.mxu0 0
  %1449 = vmatpush1.bf16.msra.mxu0 %v1409
  %1450 = vmatprep.subr.bf16.mxu0 0
  %1451 = vmatpush1.bf16.msra.mxu0 %v1408
  %1452 = vmatprep.subr.bf16.mxu0 0
  %1453 = vmatpush2.bf16.msra.mxu0 0
  %1454 = vmatprep.subr.bf16.mxu0 0
  %1455 = vmatpush2.bf16.msra.mxu0 0
  %1456 = vmatprep.subr.bf16.mxu0 0
  %1457 = vmatpush2.bf16.msra.mxu0 0
  %1458 = vmatprep.subr.bf16.mxu0 0
  %1459 = vmatpush2.bf16.msra.mxu0 0
  %1460 = vmatprep.subr.bf16.mxu0 0
  %1461 = vmatpush2.bf16.msra.mxu0 0
  %1462 = vmatprep.subr.bf16.mxu0 0
  %1463 = vmatpush2.bf16.msra.mxu0 0
  %1464 = vmatprep.subr.bf16.mxu0 0
  %1465 = vmatpush2.bf16.msra.mxu0 0
  %1466 = vmatprep.subr.bf16.mxu0 0
  %1467 = vmatpush2.bf16.msra.mxu0 0
  %1468 = vmatprep.mubr.bf16.mxu0 0
  %1469 = vmatmul.mubr.bf16.gmra.mxu0 %v1413
  %v1470 = vpop.f32.mrf.mxu0
  %v1471 = vadd.f32 0.0, %v1470
  %v1472 = vpop.f32.mrf.mxu0
  %v1473 = vpop.f32.mrf.mxu0
  %v1474 = vadd.f32 0.0, %v1473
  %v1475 = vpop.f32.mrf.mxu0
  %1476 = vmatprep.mubr.bf16.mxu0 0
  %1477 = vmatmul.mubr.bf16.gmra.mxu0 %v1416
  %v1478 = vpop.f32.mrf.mxu0
  %v1479 = vadd.f32 0.0, %v1478
  %v1480 = vpop.f32.mrf.mxu0
  %v1481 = vpop.f32.mrf.mxu0
  %v1482 = vadd.f32 0.0, %v1481
  %v1483 = vpop.f32.mrf.mxu0
  %1484 = vmatprep.mubr.bf16.mxu0 0
  %1485 = vmatmul.mubr.bf16.gmra.mxu0 %v1419
  %v1486 = vpop.f32.mrf.mxu0
  %v1487 = vadd.f32 0.0, %v1486
  %v1488 = vpop.f32.mrf.mxu0
  %v1489 = vpop.f32.mrf.mxu0
  %v1490 = vadd.f32 0.0, %v1489
  %v1491 = vpop.f32.mrf.mxu0
  %1492 = vmatprep.mubr.bf16.mxu0 0
  %1493 = vmatmul.mubr.bf16.gmra.mxu0 %v1422
  %v1494 = vpop.f32.mrf.mxu0
  %v1495 = vadd.f32 0.0, %v1494
  %v1496 = vpop.f32.mrf.mxu0
  %v1497 = vpop.f32.mrf.mxu0
  %v1498 = vadd.f32 0.0, %v1497
  %v1499 = vpop.f32.mrf.mxu0
  %1500 = vmatprep.mubr.bf16.mxu0 0
  %1501 = vmatmul.mubr.bf16.gmra.mxu0 %v1425
  %v1502 = vpop.f32.mrf.mxu0
  %v1503 = vadd.f32 0.0, %v1502
  %v1504 = vpop.f32.mrf.mxu0
  %v1505 = vpop.f32.mrf.mxu0
  %v1506 = vadd.f32 0.0, %v1505
  %v1507 = vpop.f32.mrf.mxu0
  %1508 = vmatprep.mubr.bf16.mxu0 0
  %1509 = vmatmul.mubr.bf16.gmra.mxu0 %v1428
  %v1510 = vpop.f32.mrf.mxu0
  %v1511 = vadd.f32 0.0, %v1510
  %v1512 = vpop.f32.mrf.mxu0
  %v1513 = vpop.f32.mrf.mxu0
  %v1514 = vadd.f32 0.0, %v1513
  %v1515 = vpop.f32.mrf.mxu0
  %1516 = vmatprep.mubr.bf16.mxu0 0
  %1517 = vmatmul.mubr.bf16.gmra.mxu0 %v1431
  %v1518 = vpop.f32.mrf.mxu0
  %v1519 = vadd.f32 0.0, %v1518
  %v1520 = vpop.f32.mrf.mxu0
  %v1521 = vpop.f32.mrf.mxu0
  %v1522 = vadd.f32 0.0, %v1521
  %v1523 = vpop.f32.mrf.mxu0
  %1524 = vmatprep.mubr.bf16.mxu0 0
  %1525 = vmatmul.mubr.bf16.gmra.mxu0 %v1434
  %v1526 = vpop.f32.mrf.mxu0
  %v1527 = vadd.f32 0.0, %v1526
  %v1528 = vpop.f32.mrf.mxu0
  %v1529 = vpop.f32.mrf.mxu0
  %v1530 = vadd.f32 0.0, %v1529
  %v1531 = vpop.f32.mrf.mxu0
  %1532 = vdwg.mxu0
  %v1533 = vld [vmem:[%s2 + $0x8] sm:$0xff]
  %v1534 = vld [vmem:[%s2 + $0x18] sm:$0xff]
  %v1535 = vld [vmem:[%s2 + $0x28] sm:$0xff]
  %v1536 = vld [vmem:[%s2 + $0x38] sm:$0xff]
  %v1537 = vld [vmem:[%s2 + $0x48] sm:$0xff]
  %v1538 = vld [vmem:[%s2 + $0x58] sm:$0xff]
  %v1539 = vld [vmem:[%s2 + $0x68] sm:$0xff]
  %v1540 = vld [vmem:[%s2 + $0x78] sm:$0xff]
  %v1541 = vld [vmem:[%s2 + $0x88] sm:$0xff]
  %v1542 = vld [vmem:[%s2 + $0x98] sm:$0xff]
  %v1543 = vld [vmem:[%s2 + $0xa8] sm:$0xff]
  %v1544 = vld [vmem:[%s2 + $0xb8] sm:$0xff]
  %v1545 = vld [vmem:[%s2 + $0xc8] sm:$0xff]
  %v1546 = vld [vmem:[%s2 + $0xd8] sm:$0xff]
  %v1547 = vld [vmem:[%s2 + $0xe8] sm:$0xff]
  %v1548 = vld [vmem:[%s2 + $0xf8] sm:$0xff]
  %v1549 = vadd.f32 %v1471, %v1533
  %v1550 = vadd.f32 %v1474, %v1534
  %v1551 = vadd.f32 %v1479, %v1535
  %v1552 = vadd.f32 %v1482, %v1536
  %v1553 = vadd.f32 %v1487, %v1537
  %v1554 = vadd.f32 %v1490, %v1538
  %v1555 = vadd.f32 %v1495, %v1539
  %v1556 = vadd.f32 %v1498, %v1540
  %v1557 = vadd.f32 %v1503, %v1541
  %v1558 = vadd.f32 %v1506, %v1542
  %v1559 = vadd.f32 %v1511, %v1543
  %v1560 = vadd.f32 %v1514, %v1544
  %v1561 = vadd.f32 %v1519, %v1545
  %v1562 = vadd.f32 %v1522, %v1546
  %v1563 = vadd.f32 %v1527, %v1547
  %v1564 = vadd.f32 %v1530, %v1548
  %v1565 = vlaneseq
  %v1566 = vshrl.u32 %v1565, 7
  %v1567 = vlaneseq
  %v1568 = vshrl.u32 %v1567, 7
  %v1569 = vsub.s32 0, %v1568
  %v1570 = vrot.slane %v1383, %v1569
  %v1571 = vmul.f32 %v1549, %v1570
  %v1572 = vmul.f32 %v1550, %v1570
  %v1573 = vmul.f32 %v1551, %v1570
  %v1574 = vmul.f32 %v1552, %v1570
  %v1575 = vmul.f32 %v1553, %v1570
  %v1576 = vmul.f32 %v1554, %v1570
  %v1577 = vmul.f32 %v1555, %v1570
  %v1578 = vmul.f32 %v1556, %v1570
  %v1579 = vsel %vm254, %v1571, 0.0
  %1580 = vadd.xlane.f32.xlu0 %v1579
  %v1581 = vpop.xlane.xlu0 %1580
  %v1582 = vsel %vm254, %v1572, 0.0
  %1583 = vadd.xlane.f32.xlu0 %v1582
  %v1584 = vpop.xlane.xlu0 %1583
  %v1585 = vsel %vm254, %v1573, 0.0
  %1586 = vadd.xlane.f32.xlu0 %v1585
  %v1587 = vpop.xlane.xlu0 %1586
  %v1588 = vsel %vm254, %v1574, 0.0
  %1589 = vadd.xlane.f32.xlu0 %v1588
  %v1590 = vpop.xlane.xlu0 %1589
  %v1591 = vsel %vm254, %v1575, 0.0
  %1592 = vadd.xlane.f32.xlu0 %v1591
  %v1593 = vpop.xlane.xlu0 %1592
  %v1594 = vsel %vm254, %v1576, 0.0
  %1595 = vadd.xlane.f32.xlu0 %v1594
  %v1596 = vpop.xlane.xlu0 %1595
  %v1597 = vsel %vm254, %v1577, 0.0
  %1598 = vadd.xlane.f32.xlu0 %v1597
  %v1599 = vpop.xlane.xlu0 %1598
  %v1600 = vsel %vm254, %v1578, 0.0
  %1601 = vadd.xlane.f32.xlu0 %v1600
  %v1602 = vpop.xlane.xlu0 %1601
  %v1603 = vmax.f32 %v1581, %v1593
  %v1604 = vmax.f32 %v1584, %v1596
  %v1605 = vmax.f32 %v1587, %v1599
  %v1606 = vmax.f32 %v1590, %v1602
  %v1607 = vmax.f32 %v1603, %v1604
  %v1608 = vmax.f32 %v1605, %v1606
  %v1609 = vmax.f32 %v1607, %v1608
  %v1610 = vrot.slane %v1609, 4
  %v1611 = vmax.f32 %v1609, %v1610
  %v1612 = vrot.slane %v1611, 2
  %v1613 = vmax.f32 %v1611, %v1612
  %v1614 = vrot.slane %v1613, 1
  %v1615 = vmax.f32 %v1613, %v1614
  %v1616 = vsub.f32 %v1581, %v1615
  %v1617 = vsub.f32 %v1584, %v1615
  %v1618 = vsub.f32 %v1587, %v1615
  %v1619 = vsub.f32 %v1590, %v1615
  %v1620 = vsub.f32 %v1593, %v1615
  %v1621 = vsub.f32 %v1596, %v1615
  %v1622 = vsub.f32 %v1599, %v1615
  %v1623 = vsub.f32 %v1602, %v1615
  %v1624 = vmul.f32 %v1616, 1.442695
  %v1625 = vpow.pop %v1624
  %v1626 = vmul.f32 %v1617, 1.442695
  %v1627 = vpow.pop %v1626
  %v1628 = vmul.f32 %v1618, 1.442695
  %v1629 = vpow.pop %v1628
  %v1630 = vmul.f32 %v1619, 1.442695
  %v1631 = vpow.pop %v1630
  %v1632 = vmul.f32 %v1620, 1.442695
  %v1633 = vpow.pop %v1632
  %v1634 = vmul.f32 %v1621, 1.442695
  %v1635 = vpow.pop %v1634
  %v1636 = vmul.f32 %v1622, 1.442695
  %v1637 = vpow.pop %v1636
  %v1638 = vmul.f32 %v1623, 1.442695
  %v1639 = vpow.pop %v1638
  %v1640 = vadd.f32 %v1625, %v1627
  %v1641 = vadd.f32 %v1640, %v1629
  %v1642 = vadd.f32 %v1641, %v1631
  %v1643 = vadd.f32 %v1642, %v1633
  %v1644 = vadd.f32 %v1643, %v1635
  %v1645 = vadd.f32 %v1644, %v1637
  %v1646 = vadd.f32 %v1645, %v1639
  %v1647 = vrot.slane %v1646, 4
  %v1648 = vadd.f32 %v1646, %v1647
  %v1649 = vrot.slane %v1648, 2
  %v1650 = vadd.f32 %v1648, %v1649
  %v1651 = vrot.slane %v1650, 1
  %v1652 = vadd.f32 %v1650, %v1651
  %v1653 = vrcp.pop %v1652
  %v1654 = vmul.f32 %v1625, %v1653
  %v1655 = vmul.f32 %v1627, %v1653
  %v1656 = vmul.f32 %v1629, %v1653
  %v1657 = vmul.f32 %v1631, %v1653
  %v1658 = vmul.f32 %v1633, %v1653
  %v1659 = vmul.f32 %v1635, %v1653
  %v1660 = vmul.f32 %v1637, %v1653
  %v1661 = vmul.f32 %v1639, %v1653
  %v1662 = vmul.f32 %v1654, %v1471
  %v1663 = vmul.f32 %v1655, %v1474
  %v1664 = vmul.f32 %v1656, %v1479
  %v1665 = vmul.f32 %v1657, %v1482
  %v1666 = vmul.f32 %v1658, %v1487
  %v1667 = vmul.f32 %v1659, %v1490
  %v1668 = vmul.f32 %v1660, %v1495
  %v1669 = vmul.f32 %v1661, %v1498
  %vm1670 = vcmask 523520
  %v1671 = vsel %vm1670, %v1662, 0.0
  %v1672 = vsel %vm1670, %v1663, 0.0
  %v1673 = vadd.f32 %v1671, %v1672
  %v1674 = vsel %vm1670, %v1664, 0.0
  %v1675 = vadd.f32 %v1673, %v1674
  %v1676 = vsel %vm1670, %v1665, 0.0
  %v1677 = vadd.f32 %v1675, %v1676
  %v1678 = vsel %vm1670, %v1666, 0.0
  %v1679 = vadd.f32 %v1677, %v1678
  %v1680 = vsel %vm1670, %v1667, 0.0
  %v1681 = vadd.f32 %v1679, %v1680
  %v1682 = vsel %vm1670, %v1668, 0.0
  %v1683 = vadd.f32 %v1681, %v1682
  %v1684 = vsel %vm1670, %v1669, 0.0
  %v1685 = vadd.f32 %v1683, %v1684
  %v1686 = vrot.slane %v1685, 4
  %v1687 = vadd.f32 %v1685, %v1686
  %v1688 = vrot.slane %v1687, 2
  %v1689 = vadd.f32 %v1687, %v1688
  %v1690 = vrot.slane %v1689, 1
  %v1691 = vadd.f32 %v1689, %v1690
  %vm1692 = vcmp.eq.s32.totalorder %v1566, 0
  %v1693 = vsel %vm1692, 1, 0
  %v1694 = vcvt.s32.f32 %v1693
  %v1695 = vmul.f32 %v1694, %v1691
  %v1696 = vadd.f32 %v1695, 0.0
  %v1697 = vlaneseq
  %v1698 = vshrl.u32 %v1697, 7
  %v1699 = vsub.s32 1, %v1698
  %v1700 = vrot.slane %v1383, %v1699
  %v1701 = vmul.f32 %v1557, %v1700
  %v1702 = vmul.f32 %v1558, %v1700
  %v1703 = vmul.f32 %v1559, %v1700
  %v1704 = vmul.f32 %v1560, %v1700
  %v1705 = vmul.f32 %v1561, %v1700
  %v1706 = vmul.f32 %v1562, %v1700
  %v1707 = vmul.f32 %v1563, %v1700
  %v1708 = vmul.f32 %v1564, %v1700
  %v1709 = vsel %vm254, %v1701, 0.0
  %1710 = vadd.xlane.f32.xlu0 %v1709
  %v1711 = vpop.xlane.xlu0 %1710
  %v1712 = vsel %vm254, %v1702, 0.0
  %1713 = vadd.xlane.f32.xlu0 %v1712
  %v1714 = vpop.xlane.xlu0 %1713
  %v1715 = vsel %vm254, %v1703, 0.0
  %1716 = vadd.xlane.f32.xlu0 %v1715
  %v1717 = vpop.xlane.xlu0 %1716
  %v1718 = vsel %vm254, %v1704, 0.0
  %1719 = vadd.xlane.f32.xlu0 %v1718
  %v1720 = vpop.xlane.xlu0 %1719
  %v1721 = vsel %vm254, %v1705, 0.0
  %1722 = vadd.xlane.f32.xlu0 %v1721
  %v1723 = vpop.xlane.xlu0 %1722
  %v1724 = vsel %vm254, %v1706, 0.0
  %1725 = vadd.xlane.f32.xlu0 %v1724
  %v1726 = vpop.xlane.xlu0 %1725
  %v1727 = vsel %vm254, %v1707, 0.0
  %1728 = vadd.xlane.f32.xlu0 %v1727
  %v1729 = vpop.xlane.xlu0 %1728
  %v1730 = vsel %vm254, %v1708, 0.0
  %1731 = vadd.xlane.f32.xlu0 %v1730
  %v1732 = vpop.xlane.xlu0 %1731
  %v1733 = vmax.f32 %v1711, %v1723
  %v1734 = vmax.f32 %v1714, %v1726
  %v1735 = vmax.f32 %v1717, %v1729
  %v1736 = vmax.f32 %v1720, %v1732
  %v1737 = vmax.f32 %v1733, %v1734
  %v1738 = vmax.f32 %v1735, %v1736
  %v1739 = vmax.f32 %v1737, %v1738
  %v1740 = vrot.slane %v1739, 4
  %v1741 = vmax.f32 %v1739, %v1740
  %v1742 = vrot.slane %v1741, 2
  %v1743 = vmax.f32 %v1741, %v1742
  %v1744 = vrot.slane %v1743, 1
  %v1745 = vmax.f32 %v1743, %v1744
  %v1746 = vsub.f32 %v1711, %v1745
  %v1747 = vsub.f32 %v1714, %v1745
  %v1748 = vsub.f32 %v1717, %v1745
  %v1749 = vsub.f32 %v1720, %v1745
  %v1750 = vsub.f32 %v1723, %v1745
  %v1751 = vsub.f32 %v1726, %v1745
  %v1752 = vsub.f32 %v1729, %v1745
  %v1753 = vsub.f32 %v1732, %v1745
  %v1754 = vmul.f32 %v1746, 1.442695
  %v1755 = vpow.pop %v1754
  %v1756 = vmul.f32 %v1747, 1.442695
  %v1757 = vpow.pop %v1756
  %v1758 = vmul.f32 %v1748, 1.442695
  %v1759 = vpow.pop %v1758
  %v1760 = vmul.f32 %v1749, 1.442695
  %v1761 = vpow.pop %v1760
  %v1762 = vmul.f32 %v1750, 1.442695
  %v1763 = vpow.pop %v1762
  %v1764 = vmul.f32 %v1751, 1.442695
  %v1765 = vpow.pop %v1764
  %v1766 = vmul.f32 %v1752, 1.442695
  %v1767 = vpow.pop %v1766
  %v1768 = vmul.f32 %v1753, 1.442695
  %v1769 = vpow.pop %v1768
  %v1770 = vadd.f32 %v1755, %v1757
  %v1771 = vadd.f32 %v1770, %v1759
  %v1772 = vadd.f32 %v1771, %v1761
  %v1773 = vadd.f32 %v1772, %v1763
  %v1774 = vadd.f32 %v1773, %v1765
  %v1775 = vadd.f32 %v1774, %v1767
  %v1776 = vadd.f32 %v1775, %v1769
  %v1777 = vrot.slane %v1776, 4
  %v1778 = vadd.f32 %v1776, %v1777
  %v1779 = vrot.slane %v1778, 2
  %v1780 = vadd.f32 %v1778, %v1779
  %v1781 = vrot.slane %v1780, 1
  %v1782 = vadd.f32 %v1780, %v1781
  %v1783 = vrcp.pop %v1782
  %v1784 = vmul.f32 %v1755, %v1783
  %v1785 = vmul.f32 %v1757, %v1783
  %v1786 = vmul.f32 %v1759, %v1783
  %v1787 = vmul.f32 %v1761, %v1783
  %v1788 = vmul.f32 %v1763, %v1783
  %v1789 = vmul.f32 %v1765, %v1783
  %v1790 = vmul.f32 %v1767, %v1783
  %v1791 = vmul.f32 %v1769, %v1783
  %v1792 = vmul.f32 %v1784, %v1503
  %v1793 = vmul.f32 %v1785, %v1506
  %v1794 = vmul.f32 %v1786, %v1511
  %v1795 = vmul.f32 %v1787, %v1514
  %v1796 = vmul.f32 %v1788, %v1519
  %v1797 = vmul.f32 %v1789, %v1522
  %v1798 = vmul.f32 %v1790, %v1527
  %v1799 = vmul.f32 %v1791, %v1530
  %v1800 = vsel %vm1670, %v1792, 0.0
  %v1801 = vsel %vm1670, %v1793, 0.0
  %v1802 = vadd.f32 %v1800, %v1801
  %v1803 = vsel %vm1670, %v1794, 0.0
  %v1804 = vadd.f32 %v1802, %v1803
  %v1805 = vsel %vm1670, %v1795, 0.0
  %v1806 = vadd.f32 %v1804, %v1805
  %v1807 = vsel %vm1670, %v1796, 0.0
  %v1808 = vadd.f32 %v1806, %v1807
  %v1809 = vsel %vm1670, %v1797, 0.0
  %v1810 = vadd.f32 %v1808, %v1809
  %v1811 = vsel %vm1670, %v1798, 0.0
  %v1812 = vadd.f32 %v1810, %v1811
  %v1813 = vsel %vm1670, %v1799, 0.0
  %v1814 = vadd.f32 %v1812, %v1813
  %v1815 = vrot.slane %v1814, 4
  %v1816 = vadd.f32 %v1814, %v1815
  %v1817 = vrot.slane %v1816, 2
  %v1818 = vadd.f32 %v1816, %v1817
  %v1819 = vrot.slane %v1818, 1
  %v1820 = vadd.f32 %v1818, %v1819
  %vm1821 = vcmp.eq.s32.totalorder %v1566, 1
  %v1822 = vsel %vm1821, 1, 0
  %v1823 = vcvt.s32.f32 %v1822
  %v1824 = vmul.f32 %v1823, %v1820
  %v1825 = vadd.f32 %v1696, %v1824
  %v1826 = vpack.c.bf16 %v1825, %v1825
  %1828 = vrot.lane.b32.xlu0 %v1826, 96
  %v1829 = vpop.permute.xlu0 %1828
  %1830 = vrot.lane.b32.xlu0 %v1408, 64
  %v1831 = vpop.permute.xlu0 %1830
  %1832 = vrot.lane.b32.xlu0 %v1409, 64
  %v1833 = vpop.permute.xlu0 %1832
  %v1837 = vsel %vm254, %v1829, 0
  %1839 = vmatprep.subr.bf16.mxu0 0
  %1840 = vmatpush1.bf16.msra.mxu0 0
  %1841 = vmatprep.subr.bf16.mxu0 0
  %1842 = vmatpush1.bf16.msra.mxu0 0
  %1843 = vmatprep.subr.bf16.mxu0 0
  %1844 = vmatpush1.bf16.msra.mxu0 0
  %1845 = vmatprep.subr.bf16.mxu0 0
  %1846 = vmatpush1.bf16.msra.mxu0 0
  %1847 = vmatprep.subr.bf16.mxu0 0
  %1848 = vmatpush1.bf16.msra.mxu0 0
  %1849 = vmatprep.subr.bf16.mxu0 0
  %1850 = vmatpush1.bf16.msra.mxu0 0
  %1851 = vmatprep.subr.bf16.mxu0 0
  %1852 = vmatpush1.bf16.msra.mxu0 %v1833
  %1853 = vmatprep.subr.bf16.mxu0 0
  %1854 = vmatpush1.bf16.msra.mxu0 %v1831
  %1855 = vmatprep.subr.bf16.mxu0 0
  %1856 = vmatpush2.bf16.msra.mxu0 0
  %1857 = vmatprep.subr.bf16.mxu0 0
  %1858 = vmatpush2.bf16.msra.mxu0 0
  %1859 = vmatprep.subr.bf16.mxu0 0
  %1860 = vmatpush2.bf16.msra.mxu0 0
  %1861 = vmatprep.subr.bf16.mxu0 0
  %1862 = vmatpush2.bf16.msra.mxu0 0
  %1863 = vmatprep.subr.bf16.mxu0 0
  %1864 = vmatpush2.bf16.msra.mxu0 0
  %1865 = vmatprep.subr.bf16.mxu0 0
  %1866 = vmatpush2.bf16.msra.mxu0 0
  %1867 = vmatprep.subr.bf16.mxu0 0
  %1868 = vmatpush2.bf16.msra.mxu0 0
  %1869 = vmatprep.subr.bf16.mxu0 0
  %1870 = vmatpush2.bf16.msra.mxu0 0
  %1871 = vmatprep.mubr.bf16.mxu0 0
  %1872 = vmatmul.mubr.bf16.gmra.mxu0 %v1837
  %v1873 = vpop.f32.mrf.mxu0
  %v1874 = vadd.f32 0.0, %v1873
  %v1875 = vpop.f32.mrf.mxu0
  %v1876 = vpop.f32.mrf.mxu0
  %v1877 = vpop.f32.mrf.mxu0
  %1878 = vdwg.mxu0
  %v1879 = vadd.f32 %v1337, %v1874
  %v1880 = vpack.c.bf16 %v1879, %v1879
  %v1881 = vld [vmem:[%s4 + $0x4] sm:$0xff]
  %v1882 = vld [vmem:[%s4 + $0x10] sm:$0xff]
  %v1883 = vld [vmem:[%s4 + $0x1c] sm:$0xff]
  %v1884 = vld [vmem:[%s4 + $0x28] sm:$0xff]
  %v1889 = vunpack.c.l.b16 %v1881
  %v1890 = vunpack.c.h.b16 %v1881
  %v1891 = vunpack.c.l.b16 %v1882
  %v1892 = vunpack.c.h.b16 %v1882
  %v1893 = vunpack.c.l.b16 %v1883
  %v1894 = vunpack.c.h.b16 %v1883
  %v1895 = vunpack.c.l.b16 %v1884
  %v1896 = vunpack.c.h.b16 %v1884
  %v1897 = vpack.c.b16 %v1891, %v1889
  %v1898 = vpack.c.b16 %v1892, %v1890
  %v1899 = vpack.c.b16 %v1895, %v1893
  %v1900 = vpack.c.b16 %v1896, %v1894
  %1901 = vrot.lane.b32.xlu0 %v1897, 32
  %v1902 = vpop.permute.xlu0 %1901
  %1903 = vrot.lane.b32.xlu0 %v1898, 32
  %v1904 = vpop.permute.xlu0 %1903
  %1905 = vrot.lane.b32.xlu0 %v1899, 32
  %v1906 = vpop.permute.xlu0 %1905
  %1907 = vrot.lane.b32.xlu0 %v1900, 32
  %v1908 = vpop.permute.xlu0 %1907
  %vm1909 = vcmask 261120
  %v1910 = vsel %vm1909, %v1902, %v1904
  %v1911 = vsel %vm1909, %v1906, %v1908
  %v1915 = vsel %vm254, %v1880, 0
  %1917 = vmatprep.subr.bf16.mxu0 0
  %1918 = vmatpush1.bf16.msra.mxu0 0
  %1919 = vmatprep.subr.bf16.mxu0 0
  %1920 = vmatpush1.bf16.msra.mxu0 0
  %1921 = vmatprep.subr.bf16.mxu0 0
  %1922 = vmatpush1.bf16.msra.mxu0 0
  %1923 = vmatprep.subr.bf16.mxu0 0
  %1924 = vmatpush1.bf16.msra.mxu0 0
  %1925 = vmatprep.subr.bf16.mxu0 0
  %1926 = vmatpush1.bf16.msra.mxu0 0
  %1927 = vmatprep.subr.bf16.mxu0 0
  %1928 = vmatpush1.bf16.msra.mxu0 0
  %1929 = vmatprep.subr.bf16.mxu0 0
  %1930 = vmatpush1.bf16.msra.mxu0 %v1911
  %1931 = vmatprep.subr.bf16.mxu0 0
  %1932 = vmatpush1.bf16.msra.mxu0 %v1910
  %1933 = vmatprep.subr.bf16.mxu0 0
  %1934 = vmatpush2.bf16.msra.mxu0 0
  %1935 = vmatprep.subr.bf16.mxu0 0
  %1936 = vmatpush2.bf16.msra.mxu0 0
  %1937 = vmatprep.subr.bf16.mxu0 0
  %1938 = vmatpush2.bf16.msra.mxu0 0
  %1939 = vmatprep.subr.bf16.mxu0 0
  %1940 = vmatpush2.bf16.msra.mxu0 0
  %1941 = vmatprep.subr.bf16.mxu0 0
  %1942 = vmatpush2.bf16.msra.mxu0 0
  %1943 = vmatprep.subr.bf16.mxu0 0
  %1944 = vmatpush2.bf16.msra.mxu0 0
  %1945 = vmatprep.subr.bf16.mxu0 0
  %1946 = vmatpush2.bf16.msra.mxu0 0
  %1947 = vmatprep.subr.bf16.mxu0 0
  %1948 = vmatpush2.bf16.msra.mxu0 0
  %1949 = vmatprep.mubr.bf16.mxu0 0
  %1950 = vmatmul.mubr.bf16.gmra.mxu0 %v1915
  %v1951 = vpop.f32.mrf.mxu0
  %v1952 = vadd.f32 0.0, %v1951
  %v1953 = vpop.f32.mrf.mxu0
  %v1954 = vpop.f32.mrf.mxu0
  %v1955 = vpop.f32.mrf.mxu0
  %1956 = vdwg.mxu0
  %v1957 = vmax.f32 %v1952, 0.0
  %v1958 = vlaneseq
  %v1959 = vshrl.u32 %v1958, 7
  %v1960 = vsub.s32 0, %v1959
  %v1961 = vrot.slane %v1308, %v1960
  %v1962 = vmul.f32 %v1879, %v1961
  %vm1963 = vcmask 254976
  %v1964 = vsel %vm1963, %v1962, 0.0
  %1965 = vadd.xlane.f32.xlu0 %v1964
  %v1966 = vpop.xlane.xlu0 %1965
  %v1967 = vlaneseq
  %v1968 = vshrl.u32 %v1967, 7
  %v1969 = vsub.s32 0, %v1968
  %v1970 = vrot.slane %v1309, %v1969
  %v1971 = vmul.f32 %v1957, %v1970
  %vm1972 = vcmask 517120
  %v1973 = vsel %vm1972, %v1971, 0.0
  %1974 = vadd.xlane.f32.xlu0 %v1973
  %v1975 = vpop.xlane.xlu0 %1974
  %v1976 = vadd.f32 %v1966, %v1975
  %v1977 = vlaneseq
  %v1978 = vshrl.u32 %v1977, 7
  %v1979 = vsub.s32 0, %v1978
  %v1980 = vrot.slane %v1310, %v1979
  %v1981 = vadd.f32 %v1976, %v1980
  %1983 = vset.pattern.permute.xlu0 0
  %1984 = vperm.xlu0 %1983, %v1981
  %v1985 = vpop.permute.xlu0 %1984
  %1987 = vst [vmem:[%s7] sm:$0x3] %v1985
  // Predicated region
  $region30: #{tramap_forward.1} parent=0 // pred_check
    _
  $region31: #{tramap_forward.1} parent=0 // pred_check_branch
    %1989 = sbr.rel (0) target = $region33
  $region32: #{tramap_forward.1} parent=0 // pred_region
    _
  $region33: #{tramap_forward.1} parent=0 // pred_fallthru
    _
  // Predicated region
  $region34: #{tramap_forward.1} parent=0 // pred_check
    _
  $region35: #{tramap_forward.1} parent=0 // pred_check_branch
    %1991 = sbr.rel (0) target = $region37
  $region36: #{tramap_forward.1} parent=0 // pred_region
    _
  $region37: #{tramap_forward.1} parent=0 // pred_fallthru
    _

</llo_original>
